<compile_context>
chip_gen: v5e
topology: v5e:2x2
jax: 0.10.0
libtpu: 0.0.40
codegen_flags: <defaults>
</compile_context>

<pallas_src>
import functools

import jax
import jax.numpy as jnp
from jax import lax
from jax.experimental import pallas as pl
from jax.experimental.pallas import tpu as pltpu

_SQRT2_INV = 0.7071067811865476


def _gelu_exact(x):
    # nn.GELU() default = exact erf-based GELU.
    return 0.5 * x * (1.0 + lax.erf(x * _SQRT2_INV))


def _block_kernel(x_ref,
                  wc1_ref, wc2_ref, wl1_ref, wl2_ref, wo1_ref, wo2_ref,
                  bc1_ref, bc2_ref, bl1_ref, bl2_ref, bo1_ref, bo2_ref,
                  o_ref, *, compute_dtype):
    """One batch block per grid step.  x_ref/o_ref: (TB*C, LAT*LON), lane-dense.

    rows = (tb, c), lanes = (lat, lon); the whole forward is six matmuls.
    """
    cd = compute_dtype

    x = x_ref[...]                                                   # (TB*C, L)

    # ---- channel mix (contract over C): left-multiply, BN affine pre-folded ----
    h = jnp.dot(wc1_ref[...], x, preferred_element_type=jnp.float32) + bc1_ref[...]
    y = jnp.dot(wc2_ref[...], _gelu_exact(h).astype(cd),
                preferred_element_type=jnp.float32) + bc2_ref[...]   # (TB*C, L)

    # ---- LAT mix (contract lane-group `lat`): right-multiply, kron(W, I_LON) ---
    h = jnp.dot(y.astype(cd), wl1_ref[...],
                preferred_element_type=jnp.float32) + bl1_ref[...]   # (TB*C, LATef*LON)
    y = jnp.dot(_gelu_exact(h).astype(cd), wl2_ref[...],
                preferred_element_type=jnp.float32) + bl2_ref[...]   # (TB*C, L)

    # ---- LON mix (contract lane-group `lon`): right-multiply, kron(I_LAT, W) ---
    h = jnp.dot(y.astype(cd), wo1_ref[...],
                preferred_element_type=jnp.float32) + bo1_ref[...]   # (TB*C, LAT*LONef)
    y = jnp.dot(_gelu_exact(h).astype(cd), wo2_ref[...],
                preferred_element_type=jnp.float32) + bo2_ref[...]   # (TB*C, L)

    o_ref[...] = y.astype(o_ref.dtype)                               # full lane-dense store


def _pick_batch_tile(B, C, L, target_steps=2, max_block_bytes=4 << 20):
    """Largest batch tile whose f32 block fits comfortably, preferring >= 2 grid
    steps so both v7x TensorCores get work (irrelevant but harmless on v5e/v6e)."""
    divisors = [d for d in range(1, B + 1) if B % d == 0]
    fits = [d for d in divisors if d * C * L * 4 <= max_block_bytes] or [1]
    best = max(fits)
    for d in sorted(fits, reverse=True):
        if B // d >= target_steps:
            best = d
            break
    return best


def block_forward(x, p, eps=1e-5, compute_dtype=jnp.float32):
    """Forward of the MLP-Mixer Block. x: (B, C, LAT, LON) float32 (NCHW).

    compute_dtype=jnp.bfloat16 halves operand traffic and suits the bf16-native
    MXUs on v6e/v7x (numerics change: ~1e-2 abs error vs f32)."""
    B, C, LAT, LON = x.shape
    L = LAT * LON

    # BatchNorm2d training-mode statistics: a cross-batch reduction, kept as a
    # cheap XLA op in the wrapper and folded into the first channel-MLP Linear.
    mean = jnp.mean(x, axis=(0, 2, 3))
    var = jnp.var(x, axis=(0, 2, 3))                 # biased, matches PyTorch normalization
    scale = p["bn_gamma"] * lax.rsqrt(var + eps)
    shift = p["bn_beta"] - mean * scale

    TB = _pick_batch_tile(B, C, L)
    nblk = B // TB

    eye_tb = jnp.eye(TB, dtype=jnp.float32)
    eye_lat = jnp.eye(LAT, dtype=jnp.float32)
    eye_lon = jnp.eye(LON, dtype=jnp.float32)

    # Channel mix in left-multiply (transposed) form, BN folded into the 1st matmul.
    wc1 = jnp.kron(eye_tb, (p["w1c"] * scale[:, None]).T)        # (TB*Cef, TB*C)
    bc1 = jnp.tile(shift @ p["w1c"] + p["b1c"], TB)[:, None]     # (TB*Cef, 1)
    wc2 = jnp.kron(eye_tb, p["w2c"].T)                           # (TB*C,  TB*Cef)
    bc2 = jnp.tile(p["b2c"], TB)[:, None]                        # (TB*C,  1)

    # LAT mix as a right-multiply over the fused (lat, lon) lane axis.
    wl1 = jnp.kron(p["w1l"], eye_lon)                            # (LAT*LON, LATef*LON)
    bl1 = jnp.repeat(p["b1l"], LON)[None, :]                     # (1, LATef*LON)
    wl2 = jnp.kron(p["w2l"], eye_lon)                            # (LATef*LON, LAT*LON)
    bl2 = jnp.repeat(p["b2l"], LON)[None, :]                     # (1, LAT*LON)

    # LON mix as a right-multiply over the fused (lat, lon) lane axis.
    wo1 = jnp.kron(eye_lat, p["w1o"])                            # (LAT*LON, LAT*LONef)
    bo1 = jnp.tile(p["b1o"], LAT)[None, :]                       # (1, LAT*LONef)
    wo2 = jnp.kron(eye_lat, p["w2o"])                            # (LAT*LONef, LAT*LON)
    bo2 = jnp.tile(p["b2o"], LAT)[None, :]                       # (1, LAT*LON)

    cd = compute_dtype
    x2d = x.reshape(B * C, L).astype(cd)                         # free contiguous reshape
    weights = [w.astype(cd) for w in (wc1, wc2, wl1, wl2, wo1, wo2)]
    biases = [bc1, bc2, bl1, bl2, bo1, bo2]                      # f32, added post-MXU

    def full_spec(a):
        nd = a.ndim
        # Weight/bias blocks use constant index maps -> fetched once, then resident.
        return pl.BlockSpec(a.shape, lambda i, _nd=nd: (0,) * _nd)

    kernel = functools.partial(_block_kernel, compute_dtype=cd)

    out2d = pl.pallas_call(
        kernel,
        out_shape=jax.ShapeDtypeStruct((B * C, L), jnp.float32),
        grid=(nblk,),
        in_specs=[pl.BlockSpec((TB * C, L), lambda i: (i, 0))]
        + [full_spec(a) for a in weights]
        + [full_spec(a) for a in biases],
        out_specs=pl.BlockSpec((TB * C, L), lambda i: (i, 0)),
        compiler_params=pltpu.CompilerParams(
            dimension_semantics=("parallel",),        # batch blocks split across TCs (v7x)
            vmem_limit_bytes=32 * 1024 * 1024,        # safe on v5e/v6e/v7x
        ),
    )(x2d, *weights, *biases)

    return out2d.reshape(B, C, LAT, LON)


def block_forward_ref(x, p, eps=1e-5):
    """Pure-JAX reference mirroring the PyTorch forward exactly."""
    mean = jnp.mean(x, axis=(0, 2, 3), keepdims=True)
    var = jnp.var(x, axis=(0, 2, 3), keepdims=True)
    xn = (x - mean) / jnp.sqrt(var + eps)
    xn = xn * p["bn_gamma"][None, :, None, None] + p["bn_beta"][None, :, None, None]

    y = jnp.transpose(xn, (0, 2, 3, 1))
    y = _gelu_exact(y @ p["w1c"] + p["b1c"]) @ p["w2c"] + p["b2c"]
    y = jnp.transpose(y, (0, 3, 2, 1))
    y = _gelu_exact(y @ p["w1l"] + p["b1l"]) @ p["w2l"] + p["b2l"]
    y = jnp.transpose(y, (0, 1, 3, 2))
    y = _gelu_exact(y @ p["w1o"] + p["b1o"]) @ p["w2o"] + p["b2o"]
    return y


def init_params(key, C, LAT, LON, ef=3):
    """Deterministic synthetic init; Linear weights stored as (in, out) = W.T."""
    ks = list(jax.random.split(key, 14))

    def lin(kw, kb, din, dout):
        bound = 1.0 / (din ** 0.5)
        w = jax.random.uniform(kw, (din, dout), jnp.float32, -bound, bound)
        b = jax.random.uniform(kb, (dout,), jnp.float32, -bound, bound)
        return w, b

    p = {}
    p["bn_gamma"] = 1.0 + 0.1 * jax.random.normal(ks[0], (C,), jnp.float32)
    p["bn_beta"] = 0.1 * jax.random.normal(ks[1], (C,), jnp.float32)
    p["w1c"], p["b1c"] = lin(ks[2], ks[3], C, C * ef)
    p["w2c"], p["b2c"] = lin(ks[4], ks[5], C * ef, C)
    p["w1l"], p["b1l"] = lin(ks[6], ks[7], LAT, LAT * ef)
    p["w2l"], p["b2l"] = lin(ks[8], ks[9], LAT * ef, LAT)
    p["w1o"], p["b1o"] = lin(ks[10], ks[11], LON, LON * ef)
    p["w2o"], p["b2o"] = lin(ks[12], ks[13], LON * ef, LON)
    return p


if __name__ == "__main__":
    # Small shapes consistent with the module layout; LAT*LON = 128 (lane-dense),
    # C multiple of 8 keeps the (sublane, lane) tiling clean.
    B, C, LAT, LON = 2, 8, 8, 16
    key = jax.random.PRNGKey(0)
    kx, kp = jax.random.split(key)
    x = jax.random.normal(kx, (B, C, LAT, LON), jnp.float32)
    params = init_params(kp, C, LAT, LON, ef=3)

    out = jax.jit(block_forward)(x, params)
    out = jax.block_until_ready(out)

    ref = block_forward_ref(x, params)
    assert out.shape == (B, C, LAT, LON)
    max_err = float(jnp.max(jnp.abs(out - ref)))
    assert max_err < 1e-3, f"mismatch vs reference: {max_err}"
    print("KERNEL_OK")
</pallas_src>

<mosaic_0001>
module attributes {stable_mosaic.version = 11 : i64} {
  func.func @_block_kernel(%arg0: i32, %arg1: memref<8x128xf32, #tpu.memory_space<vmem>>, %arg2: memref<24x8xf32, #tpu.memory_space<vmem>>, %arg3: memref<8x24xf32, #tpu.memory_space<vmem>>, %arg4: memref<128x384xf32, #tpu.memory_space<vmem>>, %arg5: memref<384x128xf32, #tpu.memory_space<vmem>>, %arg6: memref<128x384xf32, #tpu.memory_space<vmem>>, %arg7: memref<384x128xf32, #tpu.memory_space<vmem>>, %arg8: memref<24x1xf32, #tpu.memory_space<vmem>>, %arg9: memref<8x1xf32, #tpu.memory_space<vmem>>, %arg10: memref<1x384xf32, #tpu.memory_space<vmem>>, %arg11: memref<1x128xf32, #tpu.memory_space<vmem>>, %arg12: memref<1x384xf32, #tpu.memory_space<vmem>>, %arg13: memref<1x128xf32, #tpu.memory_space<vmem>>, %arg14: memref<8x128xf32, #tpu.memory_space<vmem>>) attributes {dimension_semantics = [#tpu.dimension_semantics<parallel>], iteration_bounds = array<i64: 2>, scalar_prefetch = 0 : i64, scratch_operands = 0 : i64, tpu.core_type = #tpu.core_type<tc>, window_params = [{transform_indices = @transform_0, window_bounds = array<i64: 8, 128>}, {pipeline_mode = #tpu.pipeline_mode<synchronous>, transform_indices = @transform_1, window_bounds = array<i64: 24, 8>}, {pipeline_mode = #tpu.pipeline_mode<synchronous>, transform_indices = @transform_2, window_bounds = array<i64: 8, 24>}, {pipeline_mode = #tpu.pipeline_mode<synchronous>, transform_indices = @transform_3, window_bounds = array<i64: 128, 384>}, {pipeline_mode = #tpu.pipeline_mode<synchronous>, transform_indices = @transform_4, window_bounds = array<i64: 384, 128>}, {pipeline_mode = #tpu.pipeline_mode<synchronous>, transform_indices = @transform_5, window_bounds = array<i64: 128, 384>}, {pipeline_mode = #tpu.pipeline_mode<synchronous>, transform_indices = @transform_6, window_bounds = array<i64: 384, 128>}, {pipeline_mode = #tpu.pipeline_mode<synchronous>, transform_indices = @transform_7, window_bounds = array<i64: 24, 1>}, {pipeline_mode = #tpu.pipeline_mode<synchronous>, transform_indices = @transform_8, window_bounds = array<i64: 8, 1>}, {pipeline_mode = #tpu.pipeline_mode<synchronous>, transform_indices = @transform_9, window_bounds = array<i64: 1, 384>}, {pipeline_mode = #tpu.pipeline_mode<synchronous>, transform_indices = @transform_10, window_bounds = array<i64: 1, 128>}, {pipeline_mode = #tpu.pipeline_mode<synchronous>, transform_indices = @transform_11, window_bounds = array<i64: 1, 384>}, {pipeline_mode = #tpu.pipeline_mode<synchronous>, transform_indices = @transform_12, window_bounds = array<i64: 1, 128>}, {transform_indices = @transform_13, window_bounds = array<i64: 8, 128>}]} {
    %c0 = arith.constant 0 : index
    %c0_0 = arith.constant 0 : index
    %0 = vector.load %arg1[%c0, %c0_0] : memref<8x128xf32, #tpu.memory_space<vmem>>, vector<8x128xf32>
    %c0_1 = arith.constant 0 : index
    %c0_2 = arith.constant 0 : index
    %1 = vector.load %arg2[%c0_1, %c0_2] : memref<24x8xf32, #tpu.memory_space<vmem>>, vector<24x8xf32>
    %cst = arith.constant dense<0.000000e+00> : vector<24x128xf32>
    %2 = tpu.matmul %1, %0, %cst {dimension_numbers = #tpu.dot_dimension_numbers<[1], [0], [0], [1], [0, 0, 1, 1], [], []>} : vector<24x8xf32>, vector<8x128xf32>, vector<24x128xf32> -> vector<24x128xf32>
    %c0_3 = arith.constant 0 : index
    %c0_4 = arith.constant 0 : index
    %3 = vector.load %arg8[%c0_3, %c0_4] : memref<24x1xf32, #tpu.memory_space<vmem>>, vector<24x1xf32>
    %4 = vector.broadcast %3 : vector<24x1xf32> to vector<24x128xf32>
    %5 = arith.addf %2, %4 : vector<24x128xf32>
    %c0_5 = arith.constant 0 : index
    %c0_6 = arith.constant 0 : index
    %6 = vector.load %arg3[%c0_5, %c0_6] : memref<8x24xf32, #tpu.memory_space<vmem>>, vector<8x24xf32>
    %cst_7 = arith.constant 5.000000e-01 : f32
    %7 = vector.broadcast %cst_7 : f32 to vector<24x128xf32>
    %8 = arith.mulf %7, %5 : vector<24x128xf32>
    %cst_8 = arith.constant 0.707106769 : f32
    %9 = vector.broadcast %cst_8 : f32 to vector<24x128xf32>
    %10 = arith.mulf %5, %9 : vector<24x128xf32>
    %11 = math.erf %10 : vector<24x128xf32>
    %cst_9 = arith.constant 1.000000e+00 : f32
    %12 = vector.broadcast %cst_9 : f32 to vector<24x128xf32>
    %13 = arith.addf %12, %11 : vector<24x128xf32>
    %14 = arith.mulf %8, %13 : vector<24x128xf32>
    %cst_10 = arith.constant dense<0.000000e+00> : vector<8x128xf32>
    %15 = tpu.matmul %6, %14, %cst_10 {dimension_numbers = #tpu.dot_dimension_numbers<[1], [0], [0], [1], [0, 0, 1, 1], [], []>} : vector<8x24xf32>, vector<24x128xf32>, vector<8x128xf32> -> vector<8x128xf32>
    %c0_11 = arith.constant 0 : index
    %c0_12 = arith.constant 0 : index
    %16 = vector.load %arg9[%c0_11, %c0_12] : memref<8x1xf32, #tpu.memory_space<vmem>>, vector<8x1xf32>
    %17 = vector.broadcast %16 : vector<8x1xf32> to vector<8x128xf32>
    %18 = arith.addf %15, %17 : vector<8x128xf32>
    %c0_13 = arith.constant 0 : index
    %c0_14 = arith.constant 0 : index
    %19 = vector.load %arg4[%c0_13, %c0_14] : memref<128x384xf32, #tpu.memory_space<vmem>>, vector<128x384xf32>
    %cst_15 = arith.constant dense<0.000000e+00> : vector<8x384xf32>
    %20 = tpu.matmul %18, %19, %cst_15 {dimension_numbers = #tpu.dot_dimension_numbers<[1], [0], [0], [1], [0, 0, 1, 1], [], []>} : vector<8x128xf32>, vector<128x384xf32>, vector<8x384xf32> -> vector<8x384xf32>
    %c0_16 = arith.constant 0 : index
    %c0_17 = arith.constant 0 : index
    %21 = vector.load %arg10[%c0_16, %c0_17] : memref<1x384xf32, #tpu.memory_space<vmem>>, vector<1x384xf32>
    %22 = vector.broadcast %21 : vector<1x384xf32> to vector<8x384xf32>
    %23 = arith.addf %20, %22 : vector<8x384xf32>
    %cst_18 = arith.constant 5.000000e-01 : f32
    %24 = vector.broadcast %cst_18 : f32 to vector<8x384xf32>
    %25 = arith.mulf %24, %23 : vector<8x384xf32>
    %cst_19 = arith.constant 0.707106769 : f32
    %26 = vector.broadcast %cst_19 : f32 to vector<8x384xf32>
    %27 = arith.mulf %23, %26 : vector<8x384xf32>
    %28 = math.erf %27 : vector<8x384xf32>
    %cst_20 = arith.constant 1.000000e+00 : f32
    %29 = vector.broadcast %cst_20 : f32 to vector<8x384xf32>
    %30 = arith.addf %29, %28 : vector<8x384xf32>
    %31 = arith.mulf %25, %30 : vector<8x384xf32>
    %c0_21 = arith.constant 0 : index
    %c0_22 = arith.constant 0 : index
    %32 = vector.load %arg5[%c0_21, %c0_22] : memref<384x128xf32, #tpu.memory_space<vmem>>, vector<384x128xf32>
    %cst_23 = arith.constant dense<0.000000e+00> : vector<8x128xf32>
    %33 = tpu.matmul %31, %32, %cst_23 {dimension_numbers = #tpu.dot_dimension_numbers<[1], [0], [0], [1], [0, 0, 1, 1], [], []>} : vector<8x384xf32>, vector<384x128xf32>, vector<8x128xf32> -> vector<8x128xf32>
    %c0_24 = arith.constant 0 : index
    %c0_25 = arith.constant 0 : index
    %34 = vector.load %arg11[%c0_24, %c0_25] : memref<1x128xf32, #tpu.memory_space<vmem>>, vector<1x128xf32>
    %35 = vector.broadcast %34 : vector<1x128xf32> to vector<8x128xf32>
    %36 = arith.addf %33, %35 : vector<8x128xf32>
    %c0_26 = arith.constant 0 : index
    %c0_27 = arith.constant 0 : index
    %37 = vector.load %arg6[%c0_26, %c0_27] : memref<128x384xf32, #tpu.memory_space<vmem>>, vector<128x384xf32>
    %cst_28 = arith.constant dense<0.000000e+00> : vector<8x384xf32>
    %38 = tpu.matmul %36, %37, %cst_28 {dimension_numbers = #tpu.dot_dimension_numbers<[1], [0], [0], [1], [0, 0, 1, 1], [], []>} : vector<8x128xf32>, vector<128x384xf32>, vector<8x384xf32> -> vector<8x384xf32>
    %c0_29 = arith.constant 0 : index
    %c0_30 = arith.constant 0 : index
    %39 = vector.load %arg12[%c0_29, %c0_30] : memref<1x384xf32, #tpu.memory_space<vmem>>, vector<1x384xf32>
    %40 = vector.broadcast %39 : vector<1x384xf32> to vector<8x384xf32>
    %41 = arith.addf %38, %40 : vector<8x384xf32>
    %cst_31 = arith.constant 5.000000e-01 : f32
    %42 = vector.broadcast %cst_31 : f32 to vector<8x384xf32>
    %43 = arith.mulf %42, %41 : vector<8x384xf32>
    %cst_32 = arith.constant 0.707106769 : f32
    %44 = vector.broadcast %cst_32 : f32 to vector<8x384xf32>
    %45 = arith.mulf %41, %44 : vector<8x384xf32>
    %46 = math.erf %45 : vector<8x384xf32>
    %cst_33 = arith.constant 1.000000e+00 : f32
    %47 = vector.broadcast %cst_33 : f32 to vector<8x384xf32>
    %48 = arith.addf %47, %46 : vector<8x384xf32>
    %49 = arith.mulf %43, %48 : vector<8x384xf32>
    %c0_34 = arith.constant 0 : index
    %c0_35 = arith.constant 0 : index
    %50 = vector.load %arg7[%c0_34, %c0_35] : memref<384x128xf32, #tpu.memory_space<vmem>>, vector<384x128xf32>
    %cst_36 = arith.constant dense<0.000000e+00> : vector<8x128xf32>
    %51 = tpu.matmul %49, %50, %cst_36 {dimension_numbers = #tpu.dot_dimension_numbers<[1], [0], [0], [1], [0, 0, 1, 1], [], []>} : vector<8x384xf32>, vector<384x128xf32>, vector<8x128xf32> -> vector<8x128xf32>
    %c0_37 = arith.constant 0 : index
    %c0_38 = arith.constant 0 : index
    %52 = vector.load %arg13[%c0_37, %c0_38] : memref<1x128xf32, #tpu.memory_space<vmem>>, vector<1x128xf32>
    %53 = vector.broadcast %52 : vector<1x128xf32> to vector<8x128xf32>
    %54 = arith.addf %51, %53 : vector<8x128xf32>
    %c0_39 = arith.constant 0 : index
    %c0_40 = arith.constant 0 : index
    %55 = vector.load %arg14[%c0_39, %c0_40] : memref<8x128xf32, #tpu.memory_space<vmem>>, vector<8x128xf32>
    tpu.vector_store %arg14[%c0_39, %c0_40], %54 {strides = array<i32>} : memref<8x128xf32, #tpu.memory_space<vmem>>, vector<8x128xf32>,
    return
  }
  func.func @transform_0(%arg0: i32) -> (i32, i32) {
    %c0_i32 = arith.constant 0 : i32
    %c0_i32_0 = arith.constant 0 : i32
    return %arg0, %c0_i32 : i32, i32
  }
  func.func @transform_1(%arg0: i32) -> (i32, i32) {
    %c0_i32 = arith.constant 0 : i32
    %c0_i32_0 = arith.constant 0 : i32
    %c0_i32_1 = arith.constant 0 : i32
    return %c0_i32, %c0_i32_0 : i32, i32
  }
  func.func @transform_2(%arg0: i32) -> (i32, i32) {
    %c0_i32 = arith.constant 0 : i32
    %c0_i32_0 = arith.constant 0 : i32
    %c0_i32_1 = arith.constant 0 : i32
    return %c0_i32, %c0_i32_0 : i32, i32
  }
  func.func @transform_3(%arg0: i32) -> (i32, i32) {
    %c0_i32 = arith.constant 0 : i32
    %c0_i32_0 = arith.constant 0 : i32
    %c0_i32_1 = arith.constant 0 : i32
    return %c0_i32, %c0_i32_0 : i32, i32
  }
  func.func @transform_4(%arg0: i32) -> (i32, i32) {
    %c0_i32 = arith.constant 0 : i32
    %c0_i32_0 = arith.constant 0 : i32
    %c0_i32_1 = arith.constant 0 : i32
    return %c0_i32, %c0_i32_0 : i32, i32
  }
  func.func @transform_5(%arg0: i32) -> (i32, i32) {
    %c0_i32 = arith.constant 0 : i32
    %c0_i32_0 = arith.constant 0 : i32
    %c0_i32_1 = arith.constant 0 : i32
    return %c0_i32, %c0_i32_0 : i32, i32
  }
  func.func @transform_6(%arg0: i32) -> (i32, i32) {
    %c0_i32 = arith.constant 0 : i32
    %c0_i32_0 = arith.constant 0 : i32
    %c0_i32_1 = arith.constant 0 : i32
    return %c0_i32, %c0_i32_0 : i32, i32
  }
  func.func @transform_7(%arg0: i32) -> (i32, i32) {
    %c0_i32 = arith.constant 0 : i32
    %c0_i32_0 = arith.constant 0 : i32
    %c0_i32_1 = arith.constant 0 : i32
    return %c0_i32, %c0_i32_0 : i32, i32
  }
  func.func @transform_8(%arg0: i32) -> (i32, i32) {
    %c0_i32 = arith.constant 0 : i32
    %c0_i32_0 = arith.constant 0 : i32
    %c0_i32_1 = arith.constant 0 : i32
    return %c0_i32, %c0_i32_0 : i32, i32
  }
  func.func @transform_9(%arg0: i32) -> (i32, i32) {
    %c0_i32 = arith.constant 0 : i32
    %c0_i32_0 = arith.constant 0 : i32
    %c0_i32_1 = arith.constant 0 : i32
    return %c0_i32, %c0_i32_0 : i32, i32
  }
  func.func @transform_10(%arg0: i32) -> (i32, i32) {
    %c0_i32 = arith.constant 0 : i32
    %c0_i32_0 = arith.constant 0 : i32
    %c0_i32_1 = arith.constant 0 : i32
    return %c0_i32, %c0_i32_0 : i32, i32
  }
  func.func @transform_11(%arg0: i32) -> (i32, i32) {
    %c0_i32 = arith.constant 0 : i32
    %c0_i32_0 = arith.constant 0 : i32
    %c0_i32_1 = arith.constant 0 : i32
    return %c0_i32, %c0_i32_0 : i32, i32
  }
  func.func @transform_12(%arg0: i32) -> (i32, i32) {
    %c0_i32 = arith.constant 0 : i32
    %c0_i32_0 = arith.constant 0 : i32
    %c0_i32_1 = arith.constant 0 : i32
    return %c0_i32, %c0_i32_0 : i32, i32
  }
  func.func @transform_13(%arg0: i32) -> (i32, i32) {
    %c0_i32 = arith.constant 0 : i32
    %c0_i32_0 = arith.constant 0 : i32
    return %arg0, %c0_i32 : i32, i32
  }
}

</mosaic_0001>

<llo_original>
// kernel: tile.17
$region0: #{tile.17}
  #allocation0 [shape = 's32[1]{0}', space=sflag, size = 0x4, scoped, tag = 'scoped memory for tile.17']
  %s0 = inlined_call_operand.vmem [shape: f32[48], index: 0, kind: input, shape index: {}]
  %s1 = inlined_call_operand.vmem [shape: f32[8,48], index: 1, kind: output, shape index: {}]
  // Predicated region
  $region2: #{tile.17} parent=0 // pred_check
    _
  $region3: #{tile.17} parent=0 // pred_check_branch
    %3 = sbr.rel (0) target = $region5
  $region4: #{tile.17} parent=0 // pred_region
    _
  $region5: #{tile.17} parent=0 // pred_fallthru
    _
  %v4 = vld [vmem:[%s0] ss:$0 sm:$0xff]
  %5 = vst [vmem:[%s1] sm:$0xff] %v4

// kernel: tile.18
$region0: #{tile.18}
  %s0 = inlined_call_operand.vmem [shape: f32[8,48], index: 0, kind: input, shape index: {}]
  %s1 = inlined_call_operand.vmem [shape: f32[1,384], index: 1, kind: output, shape index: {}]
  $region1: #{tile.18} parent=0
    #allocation0 [shape = 'u8[12288]{0}', space=vmem, size = 0x3000, scoped, tag = 'scoped mem for output reshape']
    %v2 = vld [vmem:[%s0] sm:$0x1]
    %vm3 = vcmask 392192
    %4 = vst.msk [vmem:[#allocation0] sm:$0x1] %vm3, %v2
    %s5 = scalar_lea.vmem %s0, 5
    %v6 = vld [vmem:[%s5] sm:$0x1]
    %s7 = scalar_lea.vmem %s0, 5
    %v8 = vld [vmem:[%s7] sm:$0x1]
    %vm9 = vcmask 130048
    %v10 = vsel %vm9, %v8, %v6
    %11 = vrot.lane.b32.xlu0 %v10, 112
    %v12 = vpop.permute.xlu0 %11
    %vm13 = vcmask 261120
    %s14 = scalar_lea.vmem [#allocation0], 16
    %15 = vst.msk [vmem:[%s14] sm:$0x1] %vm13, %v12
    %vm16 = vcmask 1048448
    %s17 = scalar_lea.vmem [#allocation0], 8
    %18 = vst.msk [vmem:[%s17] sm:$0x1] %vm16, %v12
    %s19 = scalar_lea.vmem %s0, 2
    %v20 = vld [vmem:[%s19] sm:$0x1]
    %s21 = scalar_lea.vmem %s0, 2
    %v22 = vld [vmem:[%s21] sm:$0x1]
    %vm23 = vcmask 261120
    %v24 = vsel %vm23, %v22, %v20
    %25 = vrot.lane.b32.xlu0 %v24, 96
    %v26 = vpop.permute.xlu0 %25
    %vm27 = vcmask 130048
    %s28 = scalar_lea.vmem [#allocation0], 8
    %29 = vst.msk [vmem:[%s28] sm:$0x1] %vm27, %v26
    %vm30 = vcmask 1048320
    %31 = vst.msk [vmem:[#allocation0] sm:$0x1] %vm30, %v26
    %s32 = scalar_lea.vmem %s0, 7
    %v33 = vld [vmem:[%s32] sm:$0x1]
    %34 = vrot.lane.b32.xlu0 %v33, 80
    %v35 = vpop.permute.xlu0 %34
    %vm36 = vcmask 1048192
    %s37 = scalar_lea.vmem [#allocation0], 16
    %38 = vst.msk [vmem:[%s37] sm:$0x1] %vm36, %v35
    %s39 = scalar_lea.vmem %s0, 4
    %v40 = vld [vmem:[%s39] sm:$0x1]
    %41 = vrot.lane.b32.xlu0 %v40, 64
    %v42 = vpop.permute.xlu0 %41
    %vm43 = vcmask 916992
    %s44 = scalar_lea.vmem [#allocation0], 8
    %45 = vst.msk [vmem:[%s44] sm:$0x1] %vm43, %v42
    %s46 = scalar_lea.vmem %s0, 1
    %v47 = vld [vmem:[%s46] sm:$0x1]
    %48 = vrot.lane.b32.xlu0 %v47, 48
    %v49 = vpop.permute.xlu0 %48
    %vm50 = vcmask 785792
    %51 = vst.msk [vmem:[#allocation0] sm:$0x1] %vm50, %v49
    %s52 = scalar_lea.vmem %s0, 6
    %v53 = vld [vmem:[%s52] sm:$0x1]
    %54 = vrot.lane.b32.xlu0 %v53, 32
    %v55 = vpop.permute.xlu0 %54
    %vm56 = vcmask 654592
    %s57 = scalar_lea.vmem [#allocation0], 16
    %58 = vst.msk [vmem:[%s57] sm:$0x1] %vm56, %v55
    %s59 = scalar_lea.vmem %s0, 3
    %v60 = vld [vmem:[%s59] sm:$0x1]
    %61 = vrot.lane.b32.xlu0 %v60, 16
    %v62 = vpop.permute.xlu0 %61
    %vm63 = vcmask 523392
    %s64 = scalar_lea.vmem [#allocation0], 8
    %65 = vst.msk [vmem:[%s64] sm:$0x1] %vm63, %v62
    %s67 = ssub.s32 2, 1
    %v68 = vld [vmem:[#allocation0] sm:%s67]
    %s70 = ssub.s32 2, 1
    %71 = vst [vmem:[%s1] sm:%s70] %v68
    %s72 = scalar_lea.vmem [#allocation0], 8
    %v73 = vld [vmem:[%s72] sm:%s67]
    %s75 = ssub.s32 2, 1
    %s76 = scalar_lea.vmem %s1, 1
    %77 = vst [vmem:[%s76] sm:%s75] %v73
    %s78 = scalar_lea.vmem [#allocation0], 16
    %v79 = vld [vmem:[%s78] sm:%s67]
    %s81 = ssub.s32 2, 1
    %s82 = scalar_lea.vmem %s1, 2
    %83 = vst [vmem:[%s82] sm:%s81] %v79

// kernel: tile.22
$region0: #{tile.22}
  #allocation0 [shape = 's32[1]{0}', space=sflag, size = 0x4, scoped, tag = 'scoped memory for tile.22']
  %s0 = inlined_call_operand.vmem [shape: f32[16], index: 0, kind: input, shape index: {}]
  %s1 = inlined_call_operand.vmem [shape: f32[8,16], index: 1, kind: output, shape index: {}]
  // Predicated region
  $region2: #{tile.22} parent=0 // pred_check
    _
  $region3: #{tile.22} parent=0 // pred_check_branch
    %3 = sbr.rel (0) target = $region5
  $region4: #{tile.22} parent=0 // pred_region
    _
  $region5: #{tile.22} parent=0 // pred_fallthru
    _
  %v4 = vld [vmem:[%s0] ss:$0 sm:$0xff]
  %5 = vst [vmem:[%s1] sm:$0xff] %v4

// kernel: block_forward.1
$region0: #{block_forward.1}
  #allocation0 [shape = 'u32[]', space=smem, size = 0x4, offset = 0x4, fixed_abs, tag = 'smem constant byte address 0x4 - core index']
  #allocation1 [shape = 'u32[72,128]{1,0:T(1,128)}', space=vmem, size = 0x9000, scoped, tag = 'internal scratch']
  %s0 = inlined_call_operand.vmem [shape: f32[16,128], index: 0, kind: input, shape index: {}]
  %s1 = inlined_call_operand.vmem [shape: f32[24,8], index: 1, kind: input, shape index: {}]
  %s2 = inlined_call_operand.vmem [shape: f32[8,24], index: 2, kind: input, shape index: {}]
  %s3 = inlined_call_operand.vmem [shape: f32[128,384], index: 3, kind: input, shape index: {}]
  %s4 = inlined_call_operand.vmem [shape: f32[384,128], index: 4, kind: input, shape index: {}]
  %s5 = inlined_call_operand.vmem [shape: f32[128,384], index: 5, kind: input, shape index: {}]
  %s6 = inlined_call_operand.vmem [shape: f32[384,128], index: 6, kind: input, shape index: {}]
  %s7 = inlined_call_operand.vmem [shape: f32[24,1], index: 7, kind: input, shape index: {}]
  %s8 = inlined_call_operand.vmem [shape: f32[8,1], index: 8, kind: input, shape index: {}]
  %s9 = inlined_call_operand.vmem [shape: f32[1,384], index: 9, kind: input, shape index: {}]
  %s10 = inlined_call_operand.vmem [shape: f32[1,128], index: 10, kind: input, shape index: {}]
  %s11 = inlined_call_operand.vmem [shape: f32[1,384], index: 11, kind: input, shape index: {}]
  %s12 = inlined_call_operand.vmem [shape: f32[1,128], index: 12, kind: input, shape index: {}]
  %s13 = inlined_call_operand.vmem [shape: f32[16,128], index: 13, kind: output, shape index: {}]
  %s14 = sld [smem:[#allocation0]]
  $region85: #{block_forward.1} parent=0
    _
  %s16 = ssub.s32 1, %s14
  %s17 = scalar_select 0, %s16, %s14
  loop: start=0, step=1, limit=4
  $region2: #{block_forward.1} parent=0 // loop_pre_header
    _
  $region3: #{block_forward.1} parent=0 // loop_header
    %s19 = sphi 0, %s23
    %p20 = scmp.ge.s32.totalorder %s19, 4
    %s29 = sphi 0, %s31
    %s32 = sphi 0, %s29
    %s33 = sphi 0, %s32
    %s49 = sphi 0, %s33
    %s53 = sphi 0, %s53
    %s55 = sphi 0, %s53
    %s56 = sphi 0, %s55
    %s70 = sphi 0, %s56
    %s74 = sphi 0, %s74
    %s76 = sphi 0, %s74
    %s77 = sphi 0, %s76
    %s91 = sphi 0, %s77
    %s95 = sphi 0, %s95
    %s97 = sphi 0, %s95
    %s98 = sphi 0, %s97
    %s112 = sphi 0, %s98
    %s116 = sphi 0, %s116
    %s118 = sphi 0, %s116
    %s119 = sphi 0, %s118
    %s133 = sphi 0, %s119
    %s137 = sphi 0, %s137
    %s139 = sphi 0, %s137
    %s140 = sphi 0, %s139
    %s154 = sphi 0, %s140
    %s158 = sphi 0, %s158
    %s160 = sphi 0, %s158
    %s161 = sphi 0, %s160
    %s175 = sphi 0, %s161
    %s179 = sphi 0, %s179
    %s181 = sphi 0, %s179
    %s182 = sphi 0, %s181
    %s196 = sphi 0, %s182
    %s200 = sphi 0, %s200
    %s202 = sphi 0, %s200
    %s203 = sphi 0, %s202
    %s217 = sphi 0, %s203
    %s221 = sphi 0, %s221
    %s223 = sphi 0, %s221
    %s224 = sphi 0, %s223
    %s238 = sphi 0, %s224
    %s242 = sphi 0, %s242
    %s244 = sphi 0, %s242
    %s245 = sphi 0, %s244
    %s259 = sphi 0, %s245
    %s263 = sphi 0, %s263
    %s265 = sphi 0, %s263
    %s266 = sphi 0, %s265
    %s280 = sphi 0, %s266
    %s284 = sphi 0, %s284
    %s286 = sphi 0, %s284
    %s287 = sphi 0, %s286
    %s301 = sphi 0, %s287
    %s307 = sphi 0, %s309
    %s310 = sphi 0, %s307
    %s311 = sphi 0, %s310
    %s327 = sphi 0, %s311
  $region4: #{block_forward.1} parent=0 // loop_header_branch
    %22 = sbr.rel (%p20) target = $region8
  $region5: #{block_forward.1} parent=0 // loop_body
    %s24 = ssub.s32 %s19, 1
    %s25 = ssub.s32 %s19, 2
    %s26 = sadd.s32 %s19, 1
    %s27 = ssub.s32 %s19, %s26
    %p28 = scmp.eq.s32.totalorder %s27, 0
    %s30 = sadd.s32 %s29, 1
    %s31 = scalar_select %p28, %s29, %s30
    %p34 = pneg %p28
    %p35 = scmp.eq.s32.totalorder %s19, 1
    %p36 = por %p34, %p35
    %p37 = scmp.ne.s32.totalorder %s29, %s32
    %p38 = scmp.eq.s32.totalorder %s19, 0
    %p39 = por %p37, %p38
    %p40 = scmp.ne.s32.totalorder %s29, %s32
    %p41 = scmp.eq.s32.totalorder %s24, 1
    %p42 = por %p40, %p41
    %p43 = scmp.ne.s32.totalorder %s32, %s33
    %p44 = scmp.eq.s32.totalorder %s24, 0
    %p45 = por %p43, %p44
    %p46 = scmp.ne.s32.totalorder %s32, %s33
    %p47 = scmp.eq.s32.totalorder %s25, 1
    %p48 = por %p46, %p47
    %p50 = scmp.ne.s32.totalorder %s33, %s49
    %p51 = scmp.eq.s32.totalorder %s25, 0
    %p52 = por %p50, %p51
    %s54 = sadd.s32 %s53, 1
    %p57 = scmp.eq.s32.totalorder %s19, 1
    %p58 = scmp.ne.s32.totalorder %s53, %s55
    %p59 = scmp.eq.s32.totalorder %s19, 0
    %p60 = por %p58, %p59
    %p61 = scmp.ne.s32.totalorder %s53, %s55
    %p62 = scmp.eq.s32.totalorder %s24, 1
    %p63 = por %p61, %p62
    %p64 = scmp.ne.s32.totalorder %s55, %s56
    %p65 = scmp.eq.s32.totalorder %s24, 0
    %p66 = por %p64, %p65
    %p67 = scmp.ne.s32.totalorder %s55, %s56
    %p68 = scmp.eq.s32.totalorder %s25, 1
    %p69 = por %p67, %p68
    %p71 = scmp.ne.s32.totalorder %s56, %s70
    %p72 = scmp.eq.s32.totalorder %s25, 0
    %p73 = por %p71, %p72
    %s75 = sadd.s32 %s74, 1
    %p78 = scmp.eq.s32.totalorder %s19, 1
    %p79 = scmp.ne.s32.totalorder %s74, %s76
    %p80 = scmp.eq.s32.totalorder %s19, 0
    %p81 = por %p79, %p80
    %p82 = scmp.ne.s32.totalorder %s74, %s76
    %p83 = scmp.eq.s32.totalorder %s24, 1
    %p84 = por %p82, %p83
    %p85 = scmp.ne.s32.totalorder %s76, %s77
    %p86 = scmp.eq.s32.totalorder %s24, 0
    %p87 = por %p85, %p86
    %p88 = scmp.ne.s32.totalorder %s76, %s77
    %p89 = scmp.eq.s32.totalorder %s25, 1
    %p90 = por %p88, %p89
    %p92 = scmp.ne.s32.totalorder %s77, %s91
    %p93 = scmp.eq.s32.totalorder %s25, 0
    %p94 = por %p92, %p93
    %s96 = sadd.s32 %s95, 1
    %p99 = scmp.eq.s32.totalorder %s19, 1
    %p100 = scmp.ne.s32.totalorder %s95, %s97
    %p101 = scmp.eq.s32.totalorder %s19, 0
    %p102 = por %p100, %p101
    %p103 = scmp.ne.s32.totalorder %s95, %s97
    %p104 = scmp.eq.s32.totalorder %s24, 1
    %p105 = por %p103, %p104
    %p106 = scmp.ne.s32.totalorder %s97, %s98
    %p107 = scmp.eq.s32.totalorder %s24, 0
    %p108 = por %p106, %p107
    %p109 = scmp.ne.s32.totalorder %s97, %s98
    %p110 = scmp.eq.s32.totalorder %s25, 1
    %p111 = por %p109, %p110
    %p113 = scmp.ne.s32.totalorder %s98, %s112
    %p114 = scmp.eq.s32.totalorder %s25, 0
    %p115 = por %p113, %p114
    %s117 = sadd.s32 %s116, 1
    %p120 = scmp.eq.s32.totalorder %s19, 1
    %p121 = scmp.ne.s32.totalorder %s116, %s118
    %p122 = scmp.eq.s32.totalorder %s19, 0
    %p123 = por %p121, %p122
    %p124 = scmp.ne.s32.totalorder %s116, %s118
    %p125 = scmp.eq.s32.totalorder %s24, 1
    %p126 = por %p124, %p125
    %p127 = scmp.ne.s32.totalorder %s118, %s119
    %p128 = scmp.eq.s32.totalorder %s24, 0
    %p129 = por %p127, %p128
    %p130 = scmp.ne.s32.totalorder %s118, %s119
    %p131 = scmp.eq.s32.totalorder %s25, 1
    %p132 = por %p130, %p131
    %p134 = scmp.ne.s32.totalorder %s119, %s133
    %p135 = scmp.eq.s32.totalorder %s25, 0
    %p136 = por %p134, %p135
    %s138 = sadd.s32 %s137, 1
    %p141 = scmp.eq.s32.totalorder %s19, 1
    %p142 = scmp.ne.s32.totalorder %s137, %s139
    %p143 = scmp.eq.s32.totalorder %s19, 0
    %p144 = por %p142, %p143
    %p145 = scmp.ne.s32.totalorder %s137, %s139
    %p146 = scmp.eq.s32.totalorder %s24, 1
    %p147 = por %p145, %p146
    %p148 = scmp.ne.s32.totalorder %s139, %s140
    %p149 = scmp.eq.s32.totalorder %s24, 0
    %p150 = por %p148, %p149
    %p151 = scmp.ne.s32.totalorder %s139, %s140
    %p152 = scmp.eq.s32.totalorder %s25, 1
    %p153 = por %p151, %p152
    %p155 = scmp.ne.s32.totalorder %s140, %s154
    %p156 = scmp.eq.s32.totalorder %s25, 0
    %p157 = por %p155, %p156
    %s159 = sadd.s32 %s158, 1
    %p162 = scmp.eq.s32.totalorder %s19, 1
    %p163 = scmp.ne.s32.totalorder %s158, %s160
    %p164 = scmp.eq.s32.totalorder %s19, 0
    %p165 = por %p163, %p164
    %p166 = scmp.ne.s32.totalorder %s158, %s160
    %p167 = scmp.eq.s32.totalorder %s24, 1
    %p168 = por %p166, %p167
    %p169 = scmp.ne.s32.totalorder %s160, %s161
    %p170 = scmp.eq.s32.totalorder %s24, 0
    %p171 = por %p169, %p170
    %p172 = scmp.ne.s32.totalorder %s160, %s161
    %p173 = scmp.eq.s32.totalorder %s25, 1
    %p174 = por %p172, %p173
    %p176 = scmp.ne.s32.totalorder %s161, %s175
    %p177 = scmp.eq.s32.totalorder %s25, 0
    %p178 = por %p176, %p177
    %s180 = sadd.s32 %s179, 1
    %p183 = scmp.eq.s32.totalorder %s19, 1
    %p184 = scmp.ne.s32.totalorder %s179, %s181
    %p185 = scmp.eq.s32.totalorder %s19, 0
    %p186 = por %p184, %p185
    %p187 = scmp.ne.s32.totalorder %s179, %s181
    %p188 = scmp.eq.s32.totalorder %s24, 1
    %p189 = por %p187, %p188
    %p190 = scmp.ne.s32.totalorder %s181, %s182
    %p191 = scmp.eq.s32.totalorder %s24, 0
    %p192 = por %p190, %p191
    %p193 = scmp.ne.s32.totalorder %s181, %s182
    %p194 = scmp.eq.s32.totalorder %s25, 1
    %p195 = por %p193, %p194
    %p197 = scmp.ne.s32.totalorder %s182, %s196
    %p198 = scmp.eq.s32.totalorder %s25, 0
    %p199 = por %p197, %p198
    %s201 = sadd.s32 %s200, 1
    %p204 = scmp.eq.s32.totalorder %s19, 1
    %p205 = scmp.ne.s32.totalorder %s200, %s202
    %p206 = scmp.eq.s32.totalorder %s19, 0
    %p207 = por %p205, %p206
    %p208 = scmp.ne.s32.totalorder %s200, %s202
    %p209 = scmp.eq.s32.totalorder %s24, 1
    %p210 = por %p208, %p209
    %p211 = scmp.ne.s32.totalorder %s202, %s203
    %p212 = scmp.eq.s32.totalorder %s24, 0
    %p213 = por %p211, %p212
    %p214 = scmp.ne.s32.totalorder %s202, %s203
    %p215 = scmp.eq.s32.totalorder %s25, 1
    %p216 = por %p214, %p215
    %p218 = scmp.ne.s32.totalorder %s203, %s217
    %p219 = scmp.eq.s32.totalorder %s25, 0
    %p220 = por %p218, %p219
    %s222 = sadd.s32 %s221, 1
    %p225 = scmp.eq.s32.totalorder %s19, 1
    %p226 = scmp.ne.s32.totalorder %s221, %s223
    %p227 = scmp.eq.s32.totalorder %s19, 0
    %p228 = por %p226, %p227
    %p229 = scmp.ne.s32.totalorder %s221, %s223
    %p230 = scmp.eq.s32.totalorder %s24, 1
    %p231 = por %p229, %p230
    %p232 = scmp.ne.s32.totalorder %s223, %s224
    %p233 = scmp.eq.s32.totalorder %s24, 0
    %p234 = por %p232, %p233
    %p235 = scmp.ne.s32.totalorder %s223, %s224
    %p236 = scmp.eq.s32.totalorder %s25, 1
    %p237 = por %p235, %p236
    %p239 = scmp.ne.s32.totalorder %s224, %s238
    %p240 = scmp.eq.s32.totalorder %s25, 0
    %p241 = por %p239, %p240
    %s243 = sadd.s32 %s242, 1
    %p246 = scmp.eq.s32.totalorder %s19, 1
    %p247 = scmp.ne.s32.totalorder %s242, %s244
    %p248 = scmp.eq.s32.totalorder %s19, 0
    %p249 = por %p247, %p248
    %p250 = scmp.ne.s32.totalorder %s242, %s244
    %p251 = scmp.eq.s32.totalorder %s24, 1
    %p252 = por %p250, %p251
    %p253 = scmp.ne.s32.totalorder %s244, %s245
    %p254 = scmp.eq.s32.totalorder %s24, 0
    %p255 = por %p253, %p254
    %p256 = scmp.ne.s32.totalorder %s244, %s245
    %p257 = scmp.eq.s32.totalorder %s25, 1
    %p258 = por %p256, %p257
    %p260 = scmp.ne.s32.totalorder %s245, %s259
    %p261 = scmp.eq.s32.totalorder %s25, 0
    %p262 = por %p260, %p261
    %s264 = sadd.s32 %s263, 1
    %p267 = scmp.eq.s32.totalorder %s19, 1
    %p268 = scmp.ne.s32.totalorder %s263, %s265
    %p269 = scmp.eq.s32.totalorder %s19, 0
    %p270 = por %p268, %p269
    %p271 = scmp.ne.s32.totalorder %s263, %s265
    %p272 = scmp.eq.s32.totalorder %s24, 1
    %p273 = por %p271, %p272
    %p274 = scmp.ne.s32.totalorder %s265, %s266
    %p275 = scmp.eq.s32.totalorder %s24, 0
    %p276 = por %p274, %p275
    %p277 = scmp.ne.s32.totalorder %s265, %s266
    %p278 = scmp.eq.s32.totalorder %s25, 1
    %p279 = por %p277, %p278
    %p281 = scmp.ne.s32.totalorder %s266, %s280
    %p282 = scmp.eq.s32.totalorder %s25, 0
    %p283 = por %p281, %p282
    %s285 = sadd.s32 %s284, 1
    %p288 = scmp.eq.s32.totalorder %s19, 1
    %p289 = scmp.ne.s32.totalorder %s284, %s286
    %p290 = scmp.eq.s32.totalorder %s19, 0
    %p291 = por %p289, %p290
    %p292 = scmp.ne.s32.totalorder %s284, %s286
    %p293 = scmp.eq.s32.totalorder %s24, 1
    %p294 = por %p292, %p293
    %p295 = scmp.ne.s32.totalorder %s286, %s287
    %p296 = scmp.eq.s32.totalorder %s24, 0
    %p297 = por %p295, %p296
    %p298 = scmp.ne.s32.totalorder %s286, %s287
    %p299 = scmp.eq.s32.totalorder %s25, 1
    %p300 = por %p298, %p299
    %p302 = scmp.ne.s32.totalorder %s287, %s301
    %p303 = scmp.eq.s32.totalorder %s25, 0
    %p304 = por %p302, %p303
    %s305 = ssub.s32 %s19, %s26
    %p306 = scmp.eq.s32.totalorder %s305, 0
    %s308 = sadd.s32 %s307, 1
    %s309 = scalar_select %p306, %s307, %s308
    %p312 = pneg %p306
    %p313 = scmp.eq.s32.totalorder %s19, 1
    %p314 = por %p312, %p313
    %p315 = scmp.ne.s32.totalorder %s307, %s310
    %p316 = scmp.eq.s32.totalorder %s19, 0
    %p317 = por %p315, %p316
    %p318 = scmp.ne.s32.totalorder %s307, %s310
    %p319 = scmp.eq.s32.totalorder %s24, 1
    %p320 = por %p318, %p319
    %p321 = scmp.ne.s32.totalorder %s310, %s311
    %p322 = scmp.eq.s32.totalorder %s24, 0
    %p323 = por %p321, %p322
    %p324 = scmp.ne.s32.totalorder %s310, %s311
    %p325 = scmp.eq.s32.totalorder %s25, 1
    %p326 = por %p324, %p325
    %p328 = scmp.ne.s32.totalorder %s311, %s327
    %p329 = scmp.eq.s32.totalorder %s25, 0
    %p330 = por %p328, %p329
    %p331 = scmp.le.s32.totalorder 1, %s19
    %p332 = scmp.lt.s32.totalorder %s19, 3
    %p333 = pnand %p331, %p332
    %p334 = pneg %p333
    // Predicated region
    $region9: #{block_forward.1} parent=5 // pred_check
      _
    $region10: #{block_forward.1} parent=5 // pred_check_branch
      %336 = sbr.rel (%p333) target = $region12
    $region11: #{block_forward.1} parent=5 // pred_region
      %s337 = ssub.s32 %s19, 1
      // Predicated region
      $region13: #{block_forward.1} parent=11 // pred_check
        %p338 = pneg %p66
      $region14: #{block_forward.1} parent=11 // pred_check_branch
        %340 = sbr.rel (%p338) target = $region16
      $region15: #{block_forward.1} parent=11 // pred_region
        _
      $region16: #{block_forward.1} parent=11 // pred_fallthru
        _
      // Predicated region
      $region17: #{block_forward.1} parent=11 // pred_check
        %p341 = pneg %p87
      $region18: #{block_forward.1} parent=11 // pred_check_branch
        %343 = sbr.rel (%p341) target = $region20
      $region19: #{block_forward.1} parent=11 // pred_region
        _
      $region20: #{block_forward.1} parent=11 // pred_fallthru
        _
      // Predicated region
      $region21: #{block_forward.1} parent=11 // pred_check
        %p344 = pneg %p108
      $region22: #{block_forward.1} parent=11 // pred_check_branch
        %346 = sbr.rel (%p344) target = $region24
      $region23: #{block_forward.1} parent=11 // pred_region
        _
      $region24: #{block_forward.1} parent=11 // pred_fallthru
        _
      // Predicated region
      $region25: #{block_forward.1} parent=11 // pred_check
        %p347 = pneg %p129
      $region26: #{block_forward.1} parent=11 // pred_check_branch
        %349 = sbr.rel (%p347) target = $region28
      $region27: #{block_forward.1} parent=11 // pred_region
        _
      $region28: #{block_forward.1} parent=11 // pred_fallthru
        _
      // Predicated region
      $region29: #{block_forward.1} parent=11 // pred_check
        %p350 = pneg %p150
      $region30: #{block_forward.1} parent=11 // pred_check_branch
        %352 = sbr.rel (%p350) target = $region32
      $region31: #{block_forward.1} parent=11 // pred_region
        _
      $region32: #{block_forward.1} parent=11 // pred_fallthru
        _
      // Predicated region
      $region33: #{block_forward.1} parent=11 // pred_check
        %p353 = pneg %p171
      $region34: #{block_forward.1} parent=11 // pred_check_branch
        %355 = sbr.rel (%p353) target = $region36
      $region35: #{block_forward.1} parent=11 // pred_region
        _
      $region36: #{block_forward.1} parent=11 // pred_fallthru
        _
      // Predicated region
      $region37: #{block_forward.1} parent=11 // pred_check
        %p356 = pneg %p192
      $region38: #{block_forward.1} parent=11 // pred_check_branch
        %358 = sbr.rel (%p356) target = $region40
      $region39: #{block_forward.1} parent=11 // pred_region
        _
      $region40: #{block_forward.1} parent=11 // pred_fallthru
        _
      // Predicated region
      $region41: #{block_forward.1} parent=11 // pred_check
        %p359 = pneg %p213
      $region42: #{block_forward.1} parent=11 // pred_check_branch
        %361 = sbr.rel (%p359) target = $region44
      $region43: #{block_forward.1} parent=11 // pred_region
        _
      $region44: #{block_forward.1} parent=11 // pred_fallthru
        _
      // Predicated region
      $region45: #{block_forward.1} parent=11 // pred_check
        %p362 = pneg %p234
      $region46: #{block_forward.1} parent=11 // pred_check_branch
        %364 = sbr.rel (%p362) target = $region48
      $region47: #{block_forward.1} parent=11 // pred_region
        _
      $region48: #{block_forward.1} parent=11 // pred_fallthru
        _
      // Predicated region
      $region49: #{block_forward.1} parent=11 // pred_check
        %p365 = pneg %p255
      $region50: #{block_forward.1} parent=11 // pred_check_branch
        %367 = sbr.rel (%p365) target = $region52
      $region51: #{block_forward.1} parent=11 // pred_region
        _
      $region52: #{block_forward.1} parent=11 // pred_fallthru
        _
      // Predicated region
      $region53: #{block_forward.1} parent=11 // pred_check
        %p368 = pneg %p276
      $region54: #{block_forward.1} parent=11 // pred_check_branch
        %370 = sbr.rel (%p368) target = $region56
      $region55: #{block_forward.1} parent=11 // pred_region
        _
      $region56: #{block_forward.1} parent=11 // pred_fallthru
        _
      // Predicated region
      $region57: #{block_forward.1} parent=11 // pred_check
        %p371 = pneg %p297
      $region58: #{block_forward.1} parent=11 // pred_check_branch
        %373 = sbr.rel (%p371) target = $region60
      $region59: #{block_forward.1} parent=11 // pred_region
        _
      $region60: #{block_forward.1} parent=11 // pred_fallthru
        _
    $region12: #{block_forward.1} parent=5 // pred_fallthru
      _
    %p374 = scmp.lt.s32.totalorder %s19, 2
    // Predicated region
    $region61: #{block_forward.1} parent=5 // pred_check
      %p375 = pneg %p374
    $region62: #{block_forward.1} parent=5 // pred_check_branch
      %377 = sbr.rel (%p375) target = $region64
    $region63: #{block_forward.1} parent=5 // pred_region
      // Predicated region
      $region65: #{block_forward.1} parent=63 // pred_check
        %p378 = pneg %p39
      $region66: #{block_forward.1} parent=63 // pred_check_branch
        %380 = sbr.rel (%p378) target = $region68
      $region67: #{block_forward.1} parent=63 // pred_region
        %p381 = scmp.lt.s32.totalorder %s19, 1
        %s382 = scalar_select %p381, %s19, 1
        %s383 = smul.addr %s382, 8
        %s384 = scalar_lea.vmem %s0, %s383
      $region68: #{block_forward.1} parent=63 // pred_fallthru
        _
    $region64: #{block_forward.1} parent=5 // pred_fallthru
      _
    %p385 = scmp.le.s32.totalorder 1, %s19
    %p386 = scmp.lt.s32.totalorder %s19, 3
    %p387 = pnand %p385, %p386
    %p388 = pneg %p387
    // Predicated region
    $region69: #{block_forward.1} parent=5 // pred_check
      _
    $region70: #{block_forward.1} parent=5 // pred_check_branch
      %390 = sbr.rel (%p387) target = $region72
    $region71: #{block_forward.1} parent=5 // pred_region
      %s391 = ssub.s32 %s19, 1
      %p392 = scmp.lt.s32.totalorder %s24, 1
      %s393 = scalar_select %p392, %s24, 1
      %s394 = smul.addr %s393, 8
      %s395 = scalar_lea.vmem %s0, %s394
      %p396 = pneg %p45
      %p397 = pneg %p42
      %p398 = pneg %p66
      %p399 = pneg %p63
      %p400 = pneg %p87
      %p401 = pneg %p84
      %p402 = pneg %p108
      %p403 = pneg %p105
      %p404 = pneg %p129
      %p405 = pneg %p126
      %p406 = pneg %p150
      %p407 = pneg %p147
      %p408 = pneg %p171
      %p409 = pneg %p168
      %p410 = pneg %p192
      %p411 = pneg %p189
      %p412 = pneg %p213
      %p413 = pneg %p210
      %p414 = pneg %p234
      %p415 = pneg %p231
      %p416 = pneg %p255
      %p417 = pneg %p252
      %p418 = pneg %p276
      %p419 = pneg %p273
      %p420 = pneg %p297
      %p421 = pneg %p294
      %p422 = pneg %p323
      %p423 = pneg %p320
      %p424 = scmp.lt.s32.totalorder %s24, 1
      %s425 = scalar_select %p424, %s24, 1
      %s426 = smul.addr %s425, 8
      %s427 = scalar_lea.vmem %s13, %s426
      %p428 = scmp.lt.s32.totalorder %s24, 1
      %s429 = scalar_select %p428, %s24, 1
      %s430 = smul.addr %s429, 8
      %s431 = scalar_lea.vmem %s0, %s430
      %p432 = scmp.lt.s32.totalorder %s24, 1
      %s433 = scalar_select %p432, %s24, 1
      %s434 = smul.addr %s433, 8
      %s435 = scalar_lea.vmem %s13, %s434
      %v436 = vld [vmem:[%s431] sm:$0xff]
      %v437 = vld [vmem:[%s1] sm:$0xff]
      %v438 = vld [vmem:[%s1 + $0x8] sm:$0xff]
      %v439 = vld [vmem:[%s1 + $0x10] sm:$0xff]
      %v440 = vld [vmem:[%s7] sm:$0xff]
      %v441 = vld [vmem:[%s7 + $0x8] sm:$0xff]
      %v442 = vld [vmem:[%s7 + $0x10] sm:$0xff]
      %444 = vset.pattern.permute.xlu0 0
      %445 = vperm.xlu0 %444, %v440
      %v446 = vpop.permute.xlu0 %445
      %449 = vset.pattern.permute.xlu0 0
      %450 = vperm.xlu0 %449, %v441
      %v451 = vpop.permute.xlu0 %450
      %454 = vset.pattern.permute.xlu0 0
      %455 = vperm.xlu0 %454, %v442
      %v456 = vpop.permute.xlu0 %455
      %vm458 = vcmask 64512
      %v460 = vsel %vm458, %v437, 0
      %v463 = vsel %vm458, %v438, 0
      %v466 = vsel %vm458, %v439, 0
      %468 = vmatpush.msra.mxu0 0.0
      %469 = vmatpush.msra.mxu0 0.0
      %470 = vmatpush.msra.mxu0 0.0
      %471 = vmatpush.msra.mxu0 0.0
      %472 = vmatpush.msra.mxu0 0.0
      %473 = vmatpush.msra.mxu0 0.0
      %474 = vmatpush.msra.mxu0 0.0
      %475 = vmatpush.msra.mxu0 0.0
      %476 = vmatpush.msra.mxu0 0.0
      %477 = vmatpush.msra.mxu0 0.0
      %478 = vmatpush.msra.mxu0 0.0
      %479 = vmatpush.msra.mxu0 0.0
      %480 = vmatpush.msra.mxu0 0.0
      %481 = vmatpush.msra.mxu0 0.0
      %482 = vmatpush.msra.mxu0 0.0
      %483 = vmatpush.msra.mxu0 %v436
      %484 = vmatmul.f32.gmra.mxu0 %v460
      %v485 = vpop.f32.mrf.mxu0
      %v486 = vadd.f32 %v446, %v485
      %487 = vmatmul.f32.gmra.mxu0 %v463
      %v488 = vpop.f32.mrf.mxu0
      %v489 = vadd.f32 %v451, %v488
      %490 = vmatmul.f32.gmra.mxu0 %v466
      %v491 = vpop.f32.mrf.mxu0
      %v492 = vadd.f32 %v456, %v491
      %493 = vdwg.mxu0
      %v494 = vld [vmem:[%s2] sm:$0xff]
      %v495 = vmul.f32 %v486, 0.5
      %v496 = vmul.f32 %v489, 0.5
      %v497 = vmul.f32 %v492, 0.5
      %v498 = vmul.f32 %v486, 0.70710677
      %v499 = vmul.f32 %v489, 0.70710677
      %v500 = vmul.f32 %v492, 0.70710677
      %v501 = vmul.f32 %v498, %v498
      %v502 = vmin.f32 16.0, %v501
      %v503 = vmul.f32 %v502, 2.1237322e-06
      %v504 = vadd.f32 %v503, 0.00028619796
      %v505 = vmul.f32 %v502, %v504
      %v506 = vadd.f32 %v505, 0.0036580483
      %v507 = vmul.f32 %v502, %v506
      %v508 = vadd.f32 %v507, 0.05243302
      %v509 = vmul.f32 %v502, %v508
      %v510 = vadd.f32 %v509, 0.18741608
      %v511 = vmul.f32 %v502, %v510
      %v512 = vadd.f32 %v511, 1.1283791
      %v513 = vmul.f32 %v498, %v512
      %v514 = vmul.f32 %v502, 3.8918573e-05
      %v515 = vadd.f32 %v514, 0.001143296
      %v516 = vmul.f32 %v502, %v515
      %v517 = vadd.f32 %v516, 0.014752088
      %v518 = vmul.f32 %v502, %v517
      %v519 = vadd.f32 %v518, 0.112945676
      %v520 = vmul.f32 %v502, %v519
      %v521 = vadd.f32 %v520, 0.4994258
      %v522 = vmul.f32 %v502, %v521
      %v523 = vadd.f32 %v522, 1.0
      %v524 = vrcp.pop %v523
      %v525 = vmul.f32 %v523, %v524
      %v526 = vsub.f32 1.0, %v525
      %v527 = vmul.f32 %v524, %v526
      %v528 = vadd.f32 %v524, %v527
      %vm529 = vweird.f32 %v523
      %vm530 = vweird.f32 %v524
      %vm531 = vmor %vm529, %vm530
      %v532 = vsel %vm531, %v524, %v528
      %v533 = vand.u32 2147483647, %v523
      %vm534 = vcmp.eq.f32.partialorder %v533, 8.507059e+37
      %v535 = vand.u32 %v523, 2147483648
      %v536 = vor.u32 1.1754944e-38, %v535
      %v537 = vsel %vm534, %v536, %v532
      %v538 = vmul.f32 %v513, %v537
      %v539 = vmin.f32 %v538, 1.0
      %v540 = vmax.f32 %v539, -1.0
      %v541 = vmul.f32 %v499, %v499
      %v542 = vmin.f32 16.0, %v541
      %v543 = vmul.f32 %v542, 2.1237322e-06
      %v544 = vadd.f32 %v543, 0.00028619796
      %v545 = vmul.f32 %v542, %v544
      %v546 = vadd.f32 %v545, 0.0036580483
      %v547 = vmul.f32 %v542, %v546
      %v548 = vadd.f32 %v547, 0.05243302
      %v549 = vmul.f32 %v542, %v548
      %v550 = vadd.f32 %v549, 0.18741608
      %v551 = vmul.f32 %v542, %v550
      %v552 = vadd.f32 %v551, 1.1283791
      %v553 = vmul.f32 %v499, %v552
      %v554 = vmul.f32 %v542, 3.8918573e-05
      %v555 = vadd.f32 %v554, 0.001143296
      %v556 = vmul.f32 %v542, %v555
      %v557 = vadd.f32 %v556, 0.014752088
      %v558 = vmul.f32 %v542, %v557
      %v559 = vadd.f32 %v558, 0.112945676
      %v560 = vmul.f32 %v542, %v559
      %v561 = vadd.f32 %v560, 0.4994258
      %v562 = vmul.f32 %v542, %v561
      %v563 = vadd.f32 %v562, 1.0
      %v564 = vrcp.pop %v563
      %v565 = vmul.f32 %v563, %v564
      %v566 = vsub.f32 1.0, %v565
      %v567 = vmul.f32 %v564, %v566
      %v568 = vadd.f32 %v564, %v567
      %vm569 = vweird.f32 %v563
      %vm570 = vweird.f32 %v564
      %vm571 = vmor %vm569, %vm570
      %v572 = vsel %vm571, %v564, %v568
      %v573 = vand.u32 2147483647, %v563
      %vm574 = vcmp.eq.f32.partialorder %v573, 8.507059e+37
      %v575 = vand.u32 %v563, 2147483648
      %v576 = vor.u32 1.1754944e-38, %v575
      %v577 = vsel %vm574, %v576, %v572
      %v578 = vmul.f32 %v553, %v577
      %v579 = vmin.f32 %v578, 1.0
      %v580 = vmax.f32 %v579, -1.0
      %v581 = vmul.f32 %v500, %v500
      %v582 = vmin.f32 16.0, %v581
      %v583 = vmul.f32 %v582, 2.1237322e-06
      %v584 = vadd.f32 %v583, 0.00028619796
      %v585 = vmul.f32 %v582, %v584
      %v586 = vadd.f32 %v585, 0.0036580483
      %v587 = vmul.f32 %v582, %v586
      %v588 = vadd.f32 %v587, 0.05243302
      %v589 = vmul.f32 %v582, %v588
      %v590 = vadd.f32 %v589, 0.18741608
      %v591 = vmul.f32 %v582, %v590
      %v592 = vadd.f32 %v591, 1.1283791
      %v593 = vmul.f32 %v500, %v592
      %v594 = vmul.f32 %v582, 3.8918573e-05
      %v595 = vadd.f32 %v594, 0.001143296
      %v596 = vmul.f32 %v582, %v595
      %v597 = vadd.f32 %v596, 0.014752088
      %v598 = vmul.f32 %v582, %v597
      %v599 = vadd.f32 %v598, 0.112945676
      %v600 = vmul.f32 %v582, %v599
      %v601 = vadd.f32 %v600, 0.4994258
      %v602 = vmul.f32 %v582, %v601
      %v603 = vadd.f32 %v602, 1.0
      %v604 = vrcp.pop %v603
      %v605 = vmul.f32 %v603, %v604
      %v606 = vsub.f32 1.0, %v605
      %v607 = vmul.f32 %v604, %v606
      %v608 = vadd.f32 %v604, %v607
      %vm609 = vweird.f32 %v603
      %vm610 = vweird.f32 %v604
      %vm611 = vmor %vm609, %vm610
      %v612 = vsel %vm611, %v604, %v608
      %v613 = vand.u32 2147483647, %v603
      %vm614 = vcmp.eq.f32.partialorder %v613, 8.507059e+37
      %v615 = vand.u32 %v603, 2147483648
      %v616 = vor.u32 1.1754944e-38, %v615
      %v617 = vsel %vm614, %v616, %v612
      %v618 = vmul.f32 %v593, %v617
      %v619 = vmin.f32 %v618, 1.0
      %v620 = vmax.f32 %v619, -1.0
      %v621 = vadd.f32 %v540, 1.0
      %v622 = vadd.f32 %v580, 1.0
      %v623 = vadd.f32 %v620, 1.0
      %v624 = vmul.f32 %v495, %v621
      %v625 = vmul.f32 %v496, %v622
      %v626 = vmul.f32 %v497, %v623
      %v627 = vld [vmem:[%s8] sm:$0xff]
      %629 = vset.pattern.permute.xlu0 0
      %630 = vperm.xlu0 %629, %v627
      %v631 = vpop.permute.xlu0 %630
      %vm633 = vcmask 195584
      %v635 = vsel %vm633, %v494, 0
      %637 = vmatpush.msra.mxu0 0.0
      %638 = vmatpush.msra.mxu0 0.0
      %639 = vmatpush.msra.mxu0 0.0
      %640 = vmatpush.msra.mxu0 0.0
      %641 = vmatpush.msra.mxu0 0.0
      %642 = vmatpush.msra.mxu0 0.0
      %643 = vmatpush.msra.mxu0 0.0
      %644 = vmatpush.msra.mxu0 0.0
      %645 = vmatpush.msra.mxu0 0.0
      %646 = vmatpush.msra.mxu0 0.0
      %647 = vmatpush.msra.mxu0 0.0
      %648 = vmatpush.msra.mxu0 0.0
      %649 = vmatpush.msra.mxu0 0.0
      %650 = vmatpush.msra.mxu0 %v626
      %651 = vmatpush.msra.mxu0 %v625
      %652 = vmatpush.msra.mxu0 %v624
      %653 = vmatmul.f32.gmra.mxu0 %v635
      %v654 = vpop.f32.mrf.mxu0
      %v655 = vadd.f32 %v631, %v654
      %656 = vdwg.mxu0
      %v657 = vld [vmem:[%s3] sm:$0xff]
      %v658 = vld [vmem:[%s3 + $0x8] sm:$0xff]
      %v659 = vld [vmem:[%s3 + $0x10] sm:$0xff]
      %v660 = vld [vmem:[%s3 + $0x18] sm:$0xff]
      %v661 = vld [vmem:[%s3 + $0x20] sm:$0xff]
      %v662 = vld [vmem:[%s3 + $0x28] sm:$0xff]
      %v663 = vld [vmem:[%s3 + $0x30] sm:$0xff]
      %v664 = vld [vmem:[%s3 + $0x38] sm:$0xff]
      %v665 = vld [vmem:[%s3 + $0x40] sm:$0xff]
      %v666 = vld [vmem:[%s3 + $0x48] sm:$0xff]
      %v667 = vld [vmem:[%s3 + $0x50] sm:$0xff]
      %v668 = vld [vmem:[%s3 + $0x58] sm:$0xff]
      %v669 = vld [vmem:[%s3 + $0x60] sm:$0xff]
      %v670 = vld [vmem:[%s3 + $0x68] sm:$0xff]
      %v671 = vld [vmem:[%s3 + $0x70] sm:$0xff]
      %v672 = vld [vmem:[%s3 + $0x78] sm:$0xff]
      %v673 = vld [vmem:[%s3 + $0x80] sm:$0xff]
      %v674 = vld [vmem:[%s3 + $0x88] sm:$0xff]
      %v675 = vld [vmem:[%s3 + $0x90] sm:$0xff]
      %v676 = vld [vmem:[%s3 + $0x98] sm:$0xff]
      %v677 = vld [vmem:[%s3 + $0xa0] sm:$0xff]
      %v678 = vld [vmem:[%s3 + $0xa8] sm:$0xff]
      %v679 = vld [vmem:[%s3 + $0xb0] sm:$0xff]
      %v680 = vld [vmem:[%s3 + $0xb8] sm:$0xff]
      %v681 = vld [vmem:[%s3 + $0xc0] sm:$0xff]
      %v682 = vld [vmem:[%s3 + $0xc8] sm:$0xff]
      %v683 = vld [vmem:[%s3 + $0xd0] sm:$0xff]
      %v684 = vld [vmem:[%s3 + $0xd8] sm:$0xff]
      %v685 = vld [vmem:[%s3 + $0xe0] sm:$0xff]
      %v686 = vld [vmem:[%s3 + $0xe8] sm:$0xff]
      %v687 = vld [vmem:[%s3 + $0xf0] sm:$0xff]
      %v688 = vld [vmem:[%s3 + $0xf8] sm:$0xff]
      %v689 = vld [vmem:[%s3 + $0x100] sm:$0xff]
      %v690 = vld [vmem:[%s3 + $0x108] sm:$0xff]
      %v691 = vld [vmem:[%s3 + $0x110] sm:$0xff]
      %v692 = vld [vmem:[%s3 + $0x118] sm:$0xff]
      %v693 = vld [vmem:[%s3 + $0x120] sm:$0xff]
      %v694 = vld [vmem:[%s3 + $0x128] sm:$0xff]
      %v695 = vld [vmem:[%s3 + $0x130] sm:$0xff]
      %v696 = vld [vmem:[%s3 + $0x138] sm:$0xff]
      %v697 = vld [vmem:[%s3 + $0x140] sm:$0xff]
      %v698 = vld [vmem:[%s3 + $0x148] sm:$0xff]
      %v699 = vld [vmem:[%s3 + $0x150] sm:$0xff]
      %v700 = vld [vmem:[%s3 + $0x158] sm:$0xff]
      %v701 = vld [vmem:[%s3 + $0x160] sm:$0xff]
      %v702 = vld [vmem:[%s3 + $0x168] sm:$0xff]
      %v703 = vld [vmem:[%s3 + $0x170] sm:$0xff]
      %v704 = vld [vmem:[%s3 + $0x178] sm:$0xff]
      %v705 = vld [vmem:[%s9] sm:$0x7]
      %v707 = vperm.slane %v705, 0
      %v708 = vperm.slane %v705, 1
      %v709 = vperm.slane %v705, 2
      %713 = vmatpush.msra.mxu0 %v702
      %714 = vmatpush.msra.mxu0 %v699
      %715 = vmatpush.msra.mxu0 %v696
      %716 = vmatpush.msra.mxu0 %v693
      %717 = vmatpush.msra.mxu0 %v690
      %718 = vmatpush.msra.mxu0 %v687
      %719 = vmatpush.msra.mxu0 %v684
      %720 = vmatpush.msra.mxu0 %v681
      %721 = vmatpush.msra.mxu0 %v678
      %722 = vmatpush.msra.mxu0 %v675
      %723 = vmatpush.msra.mxu0 %v672
      %724 = vmatpush.msra.mxu0 %v669
      %725 = vmatpush.msra.mxu0 %v666
      %726 = vmatpush.msra.mxu0 %v663
      %727 = vmatpush.msra.mxu0 %v660
      %728 = vmatpush.msra.mxu0 %v657
      %729 = vmatmul.f32.gmra.mxu0 %v655
      %v730 = vpop.f32.mrf.mxu0
      %v731 = vadd.f32 %v707, %v730
      %732 = vdwg.mxu0
      %733 = vmatpush.msra.mxu0 %v703
      %734 = vmatpush.msra.mxu0 %v700
      %735 = vmatpush.msra.mxu0 %v697
      %736 = vmatpush.msra.mxu0 %v694
      %737 = vmatpush.msra.mxu0 %v691
      %738 = vmatpush.msra.mxu0 %v688
      %739 = vmatpush.msra.mxu0 %v685
      %740 = vmatpush.msra.mxu0 %v682
      %741 = vmatpush.msra.mxu0 %v679
      %742 = vmatpush.msra.mxu0 %v676
      %743 = vmatpush.msra.mxu0 %v673
      %744 = vmatpush.msra.mxu0 %v670
      %745 = vmatpush.msra.mxu0 %v667
      %746 = vmatpush.msra.mxu0 %v664
      %747 = vmatpush.msra.mxu0 %v661
      %748 = vmatpush.msra.mxu0 %v658
      %749 = vmatmul.f32.gmra.mxu0 %v655
      %v750 = vpop.f32.mrf.mxu0
      %v751 = vadd.f32 %v708, %v750
      %752 = vdwg.mxu0
      %753 = vmatpush.msra.mxu0 %v704
      %754 = vmatpush.msra.mxu0 %v701
      %755 = vmatpush.msra.mxu0 %v698
      %756 = vmatpush.msra.mxu0 %v695
      %757 = vmatpush.msra.mxu0 %v692
      %758 = vmatpush.msra.mxu0 %v689
      %759 = vmatpush.msra.mxu0 %v686
      %760 = vmatpush.msra.mxu0 %v683
      %761 = vmatpush.msra.mxu0 %v680
      %762 = vmatpush.msra.mxu0 %v677
      %763 = vmatpush.msra.mxu0 %v674
      %764 = vmatpush.msra.mxu0 %v671
      %765 = vmatpush.msra.mxu0 %v668
      %766 = vmatpush.msra.mxu0 %v665
      %767 = vmatpush.msra.mxu0 %v662
      %768 = vmatpush.msra.mxu0 %v659
      %769 = vmatmul.f32.gmra.mxu0 %v655
      %v770 = vpop.f32.mrf.mxu0
      %v771 = vadd.f32 %v709, %v770
      %772 = vdwg.mxu0
      %v773 = vmul.f32 %v731, 0.5
      %v774 = vmul.f32 %v751, 0.5
      %v775 = vmul.f32 %v771, 0.5
      %v776 = vmul.f32 %v731, 0.70710677
      %v777 = vmul.f32 %v751, 0.70710677
      %v778 = vmul.f32 %v771, 0.70710677
      %v779 = vmul.f32 %v776, %v776
      %v780 = vmin.f32 16.0, %v779
      %v781 = vmul.f32 %v780, 2.1237322e-06
      %v782 = vadd.f32 %v781, 0.00028619796
      %v783 = vmul.f32 %v780, %v782
      %v784 = vadd.f32 %v783, 0.0036580483
      %v785 = vmul.f32 %v780, %v784
      %v786 = vadd.f32 %v785, 0.05243302
      %v787 = vmul.f32 %v780, %v786
      %v788 = vadd.f32 %v787, 0.18741608
      %v789 = vmul.f32 %v780, %v788
      %v790 = vadd.f32 %v789, 1.1283791
      %v791 = vmul.f32 %v776, %v790
      %v792 = vmul.f32 %v780, 3.8918573e-05
      %v793 = vadd.f32 %v792, 0.001143296
      %v794 = vmul.f32 %v780, %v793
      %v795 = vadd.f32 %v794, 0.014752088
      %v796 = vmul.f32 %v780, %v795
      %v797 = vadd.f32 %v796, 0.112945676
      %v798 = vmul.f32 %v780, %v797
      %v799 = vadd.f32 %v798, 0.4994258
      %v800 = vmul.f32 %v780, %v799
      %v801 = vadd.f32 %v800, 1.0
      %v802 = vrcp.pop %v801
      %v803 = vmul.f32 %v801, %v802
      %v804 = vsub.f32 1.0, %v803
      %v805 = vmul.f32 %v802, %v804
      %v806 = vadd.f32 %v802, %v805
      %vm807 = vweird.f32 %v801
      %vm808 = vweird.f32 %v802
      %vm809 = vmor %vm807, %vm808
      %v810 = vsel %vm809, %v802, %v806
      %v811 = vand.u32 2147483647, %v801
      %vm812 = vcmp.eq.f32.partialorder %v811, 8.507059e+37
      %v813 = vand.u32 %v801, 2147483648
      %v814 = vor.u32 1.1754944e-38, %v813
      %v815 = vsel %vm812, %v814, %v810
      %v816 = vmul.f32 %v791, %v815
      %v817 = vmin.f32 %v816, 1.0
      %v818 = vmax.f32 %v817, -1.0
      %v819 = vmul.f32 %v777, %v777
      %v820 = vmin.f32 16.0, %v819
      %v821 = vmul.f32 %v820, 2.1237322e-06
      %v822 = vadd.f32 %v821, 0.00028619796
      %v823 = vmul.f32 %v820, %v822
      %v824 = vadd.f32 %v823, 0.0036580483
      %v825 = vmul.f32 %v820, %v824
      %v826 = vadd.f32 %v825, 0.05243302
      %v827 = vmul.f32 %v820, %v826
      %v828 = vadd.f32 %v827, 0.18741608
      %v829 = vmul.f32 %v820, %v828
      %v830 = vadd.f32 %v829, 1.1283791
      %v831 = vmul.f32 %v777, %v830
      %v832 = vmul.f32 %v820, 3.8918573e-05
      %v833 = vadd.f32 %v832, 0.001143296
      %v834 = vmul.f32 %v820, %v833
      %v835 = vadd.f32 %v834, 0.014752088
      %v836 = vmul.f32 %v820, %v835
      %v837 = vadd.f32 %v836, 0.112945676
      %v838 = vmul.f32 %v820, %v837
      %v839 = vadd.f32 %v838, 0.4994258
      %v840 = vmul.f32 %v820, %v839
      %v841 = vadd.f32 %v840, 1.0
      %v842 = vrcp.pop %v841
      %v843 = vmul.f32 %v841, %v842
      %v844 = vsub.f32 1.0, %v843
      %v845 = vmul.f32 %v842, %v844
      %v846 = vadd.f32 %v842, %v845
      %vm847 = vweird.f32 %v841
      %vm848 = vweird.f32 %v842
      %vm849 = vmor %vm847, %vm848
      %v850 = vsel %vm849, %v842, %v846
      %v851 = vand.u32 2147483647, %v841
      %vm852 = vcmp.eq.f32.partialorder %v851, 8.507059e+37
      %v853 = vand.u32 %v841, 2147483648
      %v854 = vor.u32 1.1754944e-38, %v853
      %v855 = vsel %vm852, %v854, %v850
      %v856 = vmul.f32 %v831, %v855
      %v857 = vmin.f32 %v856, 1.0
      %v858 = vmax.f32 %v857, -1.0
      %v859 = vmul.f32 %v778, %v778
      %v860 = vmin.f32 16.0, %v859
      %v861 = vmul.f32 %v860, 2.1237322e-06
      %v862 = vadd.f32 %v861, 0.00028619796
      %v863 = vmul.f32 %v860, %v862
      %v864 = vadd.f32 %v863, 0.0036580483
      %v865 = vmul.f32 %v860, %v864
      %v866 = vadd.f32 %v865, 0.05243302
      %v867 = vmul.f32 %v860, %v866
      %v868 = vadd.f32 %v867, 0.18741608
      %v869 = vmul.f32 %v860, %v868
      %v870 = vadd.f32 %v869, 1.1283791
      %v871 = vmul.f32 %v778, %v870
      %v872 = vmul.f32 %v860, 3.8918573e-05
      %v873 = vadd.f32 %v872, 0.001143296
      %v874 = vmul.f32 %v860, %v873
      %v875 = vadd.f32 %v874, 0.014752088
      %v876 = vmul.f32 %v860, %v875
      %v877 = vadd.f32 %v876, 0.112945676
      %v878 = vmul.f32 %v860, %v877
      %v879 = vadd.f32 %v878, 0.4994258
      %v880 = vmul.f32 %v860, %v879
      %v881 = vadd.f32 %v880, 1.0
      %v882 = vrcp.pop %v881
      %v883 = vmul.f32 %v881, %v882
      %v884 = vsub.f32 1.0, %v883
      %v885 = vmul.f32 %v882, %v884
      %v886 = vadd.f32 %v882, %v885
      %vm887 = vweird.f32 %v881
      %vm888 = vweird.f32 %v882
      %vm889 = vmor %vm887, %vm888
      %v890 = vsel %vm889, %v882, %v886
      %v891 = vand.u32 2147483647, %v881
      %vm892 = vcmp.eq.f32.partialorder %v891, 8.507059e+37
      %v893 = vand.u32 %v881, 2147483648
      %v894 = vor.u32 1.1754944e-38, %v893
      %v895 = vsel %vm892, %v894, %v890
      %v896 = vmul.f32 %v871, %v895
      %v897 = vmin.f32 %v896, 1.0
      %v898 = vmax.f32 %v897, -1.0
      %v899 = vadd.f32 %v818, 1.0
      %v900 = vadd.f32 %v858, 1.0
      %v901 = vadd.f32 %v898, 1.0
      %v902 = vmul.f32 %v773, %v899
      %v903 = vmul.f32 %v774, %v900
      %v904 = vmul.f32 %v775, %v901
      %v905 = vld [vmem:[%s4] sm:$0xff]
      %v906 = vld [vmem:[%s4 + $0x8] sm:$0xff]
      %v907 = vld [vmem:[%s4 + $0x10] sm:$0xff]
      %v908 = vld [vmem:[%s4 + $0x18] sm:$0xff]
      %v909 = vld [vmem:[%s4 + $0x20] sm:$0xff]
      %v910 = vld [vmem:[%s4 + $0x28] sm:$0xff]
      %v911 = vld [vmem:[%s4 + $0x30] sm:$0xff]
      %v912 = vld [vmem:[%s4 + $0x38] sm:$0xff]
      %v913 = vld [vmem:[%s4 + $0x40] sm:$0xff]
      %v914 = vld [vmem:[%s4 + $0x48] sm:$0xff]
      %v915 = vld [vmem:[%s4 + $0x50] sm:$0xff]
      %v916 = vld [vmem:[%s4 + $0x58] sm:$0xff]
      %v917 = vld [vmem:[%s4 + $0x60] sm:$0xff]
      %v918 = vld [vmem:[%s4 + $0x68] sm:$0xff]
      %v919 = vld [vmem:[%s4 + $0x70] sm:$0xff]
      %v920 = vld [vmem:[%s4 + $0x78] sm:$0xff]
      %v921 = vld [vmem:[%s4 + $0x80] sm:$0xff]
      %v922 = vld [vmem:[%s4 + $0x88] sm:$0xff]
      %v923 = vld [vmem:[%s4 + $0x90] sm:$0xff]
      %v924 = vld [vmem:[%s4 + $0x98] sm:$0xff]
      %v925 = vld [vmem:[%s4 + $0xa0] sm:$0xff]
      %v926 = vld [vmem:[%s4 + $0xa8] sm:$0xff]
      %v927 = vld [vmem:[%s4 + $0xb0] sm:$0xff]
      %v928 = vld [vmem:[%s4 + $0xb8] sm:$0xff]
      %v929 = vld [vmem:[%s4 + $0xc0] sm:$0xff]
      %v930 = vld [vmem:[%s4 + $0xc8] sm:$0xff]
      %v931 = vld [vmem:[%s4 + $0xd0] sm:$0xff]
      %v932 = vld [vmem:[%s4 + $0xd8] sm:$0xff]
      %v933 = vld [vmem:[%s4 + $0xe0] sm:$0xff]
      %v934 = vld [vmem:[%s4 + $0xe8] sm:$0xff]
      %v935 = vld [vmem:[%s4 + $0xf0] sm:$0xff]
      %v936 = vld [vmem:[%s4 + $0xf8] sm:$0xff]
      %v937 = vld [vmem:[%s4 + $0x100] sm:$0xff]
      %v938 = vld [vmem:[%s4 + $0x108] sm:$0xff]
      %v939 = vld [vmem:[%s4 + $0x110] sm:$0xff]
      %v940 = vld [vmem:[%s4 + $0x118] sm:$0xff]
      %v941 = vld [vmem:[%s4 + $0x120] sm:$0xff]
      %v942 = vld [vmem:[%s4 + $0x128] sm:$0xff]
      %v943 = vld [vmem:[%s4 + $0x130] sm:$0xff]
      %v944 = vld [vmem:[%s4 + $0x138] sm:$0xff]
      %v945 = vld [vmem:[%s4 + $0x140] sm:$0xff]
      %v946 = vld [vmem:[%s4 + $0x148] sm:$0xff]
      %v947 = vld [vmem:[%s4 + $0x150] sm:$0xff]
      %v948 = vld [vmem:[%s4 + $0x158] sm:$0xff]
      %v949 = vld [vmem:[%s4 + $0x160] sm:$0xff]
      %v950 = vld [vmem:[%s4 + $0x168] sm:$0xff]
      %v951 = vld [vmem:[%s4 + $0x170] sm:$0xff]
      %v952 = vld [vmem:[%s4 + $0x178] sm:$0xff]
      %v953 = vld [vmem:[%s10] sm:$0x1]
      %v955 = vperm.slane %v953, 0
      %957 = vmatpush.msra.mxu0 %v920
      %958 = vmatpush.msra.mxu0 %v919
      %959 = vmatpush.msra.mxu0 %v918
      %960 = vmatpush.msra.mxu0 %v917
      %961 = vmatpush.msra.mxu0 %v916
      %962 = vmatpush.msra.mxu0 %v915
      %963 = vmatpush.msra.mxu0 %v914
      %964 = vmatpush.msra.mxu0 %v913
      %965 = vmatpush.msra.mxu0 %v912
      %966 = vmatpush.msra.mxu0 %v911
      %967 = vmatpush.msra.mxu0 %v910
      %968 = vmatpush.msra.mxu0 %v909
      %969 = vmatpush.msra.mxu0 %v908
      %970 = vmatpush.msra.mxu0 %v907
      %971 = vmatpush.msra.mxu0 %v906
      %972 = vmatpush.msra.mxu0 %v905
      %973 = vmatmul.f32.gmra.mxu0 %v902
      %v974 = vpop.f32.mrf.mxu0
      %v975 = vadd.f32 %v955, %v974
      %976 = vdwg.mxu0
      %977 = vmatpush.msra.mxu0 %v936
      %978 = vmatpush.msra.mxu0 %v935
      %979 = vmatpush.msra.mxu0 %v934
      %980 = vmatpush.msra.mxu0 %v933
      %981 = vmatpush.msra.mxu0 %v932
      %982 = vmatpush.msra.mxu0 %v931
      %983 = vmatpush.msra.mxu0 %v930
      %984 = vmatpush.msra.mxu0 %v929
      %985 = vmatpush.msra.mxu0 %v928
      %986 = vmatpush.msra.mxu0 %v927
      %987 = vmatpush.msra.mxu0 %v926
      %988 = vmatpush.msra.mxu0 %v925
      %989 = vmatpush.msra.mxu0 %v924
      %990 = vmatpush.msra.mxu0 %v923
      %991 = vmatpush.msra.mxu0 %v922
      %992 = vmatpush.msra.mxu0 %v921
      %993 = vmatmul.f32.gmra.mxu0 %v903
      %v994 = vpop.f32.mrf.mxu0
      %v995 = vadd.f32 %v975, %v994
      %996 = vdwg.mxu0
      %997 = vmatpush.msra.mxu0 %v952
      %998 = vmatpush.msra.mxu0 %v951
      %999 = vmatpush.msra.mxu0 %v950
      %1000 = vmatpush.msra.mxu0 %v949
      %1001 = vmatpush.msra.mxu0 %v948
      %1002 = vmatpush.msra.mxu0 %v947
      %1003 = vmatpush.msra.mxu0 %v946
      %1004 = vmatpush.msra.mxu0 %v945
      %1005 = vmatpush.msra.mxu0 %v944
      %1006 = vmatpush.msra.mxu0 %v943
      %1007 = vmatpush.msra.mxu0 %v942
      %1008 = vmatpush.msra.mxu0 %v941
      %1009 = vmatpush.msra.mxu0 %v940
      %1010 = vmatpush.msra.mxu0 %v939
      %1011 = vmatpush.msra.mxu0 %v938
      %1012 = vmatpush.msra.mxu0 %v937
      %1013 = vmatmul.f32.gmra.mxu0 %v904
      %v1014 = vpop.f32.mrf.mxu0
      %v1015 = vadd.f32 %v995, %v1014
      %1016 = vdwg.mxu0
      %v1017 = vld [vmem:[%s5] sm:$0xff]
      %v1018 = vld [vmem:[%s5 + $0x8] sm:$0xff]
      %v1019 = vld [vmem:[%s5 + $0x10] sm:$0xff]
      %v1020 = vld [vmem:[%s5 + $0x18] sm:$0xff]
      %v1021 = vld [vmem:[%s5 + $0x20] sm:$0xff]
      %v1022 = vld [vmem:[%s5 + $0x28] sm:$0xff]
      %v1023 = vld [vmem:[%s5 + $0x30] sm:$0xff]
      %v1024 = vld [vmem:[%s5 + $0x38] sm:$0xff]
      %v1025 = vld [vmem:[%s5 + $0x40] sm:$0xff]
      %v1026 = vld [vmem:[%s5 + $0x48] sm:$0xff]
      %v1027 = vld [vmem:[%s5 + $0x50] sm:$0xff]
      %v1028 = vld [vmem:[%s5 + $0x58] sm:$0xff]
      %v1029 = vld [vmem:[%s5 + $0x60] sm:$0xff]
      %v1030 = vld [vmem:[%s5 + $0x68] sm:$0xff]
      %v1031 = vld [vmem:[%s5 + $0x70] sm:$0xff]
      %v1032 = vld [vmem:[%s5 + $0x78] sm:$0xff]
      %v1033 = vld [vmem:[%s5 + $0x80] sm:$0xff]
      %v1034 = vld [vmem:[%s5 + $0x88] sm:$0xff]
      %v1035 = vld [vmem:[%s5 + $0x90] sm:$0xff]
      %v1036 = vld [vmem:[%s5 + $0x98] sm:$0xff]
      %v1037 = vld [vmem:[%s5 + $0xa0] sm:$0xff]
      %v1038 = vld [vmem:[%s5 + $0xa8] sm:$0xff]
      %v1039 = vld [vmem:[%s5 + $0xb0] sm:$0xff]
      %v1040 = vld [vmem:[%s5 + $0xb8] sm:$0xff]
      %v1041 = vld [vmem:[%s5 + $0xc0] sm:$0xff]
      %v1042 = vld [vmem:[%s5 + $0xc8] sm:$0xff]
      %v1043 = vld [vmem:[%s5 + $0xd0] sm:$0xff]
      %v1044 = vld [vmem:[%s5 + $0xd8] sm:$0xff]
      %v1045 = vld [vmem:[%s5 + $0xe0] sm:$0xff]
      %v1046 = vld [vmem:[%s5 + $0xe8] sm:$0xff]
      %v1047 = vld [vmem:[%s5 + $0xf0] sm:$0xff]
      %v1048 = vld [vmem:[%s5 + $0xf8] sm:$0xff]
      %v1049 = vld [vmem:[%s5 + $0x100] sm:$0xff]
      %v1050 = vld [vmem:[%s5 + $0x108] sm:$0xff]
      %v1051 = vld [vmem:[%s5 + $0x110] sm:$0xff]
      %v1052 = vld [vmem:[%s5 + $0x118] sm:$0xff]
      %v1053 = vld [vmem:[%s5 + $0x120] sm:$0xff]
      %v1054 = vld [vmem:[%s5 + $0x128] sm:$0xff]
      %v1055 = vld [vmem:[%s5 + $0x130] sm:$0xff]
      %v1056 = vld [vmem:[%s5 + $0x138] sm:$0xff]
      %v1057 = vld [vmem:[%s5 + $0x140] sm:$0xff]
      %v1058 = vld [vmem:[%s5 + $0x148] sm:$0xff]
      %v1059 = vld [vmem:[%s5 + $0x150] sm:$0xff]
      %v1060 = vld [vmem:[%s5 + $0x158] sm:$0xff]
      %v1061 = vld [vmem:[%s5 + $0x160] sm:$0xff]
      %v1062 = vld [vmem:[%s5 + $0x168] sm:$0xff]
      %v1063 = vld [vmem:[%s5 + $0x170] sm:$0xff]
      %v1064 = vld [vmem:[%s5 + $0x178] sm:$0xff]
      %v1065 = vld [vmem:[%s11] sm:$0x7]
      %v1067 = vperm.slane %v1065, 0
      %v1068 = vperm.slane %v1065, 1
      %v1069 = vperm.slane %v1065, 2
      %1073 = vmatpush.msra.mxu0 %v1062
      %1074 = vmatpush.msra.mxu0 %v1059
      %1075 = vmatpush.msra.mxu0 %v1056
      %1076 = vmatpush.msra.mxu0 %v1053
      %1077 = vmatpush.msra.mxu0 %v1050
      %1078 = vmatpush.msra.mxu0 %v1047
      %1079 = vmatpush.msra.mxu0 %v1044
      %1080 = vmatpush.msra.mxu0 %v1041
      %1081 = vmatpush.msra.mxu0 %v1038
      %1082 = vmatpush.msra.mxu0 %v1035
      %1083 = vmatpush.msra.mxu0 %v1032
      %1084 = vmatpush.msra.mxu0 %v1029
      %1085 = vmatpush.msra.mxu0 %v1026
      %1086 = vmatpush.msra.mxu0 %v1023
      %1087 = vmatpush.msra.mxu0 %v1020
      %1088 = vmatpush.msra.mxu0 %v1017
      %1089 = vmatmul.f32.gmra.mxu0 %v1015
      %v1090 = vpop.f32.mrf.mxu0
      %v1091 = vadd.f32 %v1067, %v1090
      %1092 = vdwg.mxu0
      %1093 = vmatpush.msra.mxu0 %v1063
      %1094 = vmatpush.msra.mxu0 %v1060
      %1095 = vmatpush.msra.mxu0 %v1057
      %1096 = vmatpush.msra.mxu0 %v1054
      %1097 = vmatpush.msra.mxu0 %v1051
      %1098 = vmatpush.msra.mxu0 %v1048
      %1099 = vmatpush.msra.mxu0 %v1045
      %1100 = vmatpush.msra.mxu0 %v1042
      %1101 = vmatpush.msra.mxu0 %v1039
      %1102 = vmatpush.msra.mxu0 %v1036
      %1103 = vmatpush.msra.mxu0 %v1033
      %1104 = vmatpush.msra.mxu0 %v1030
      %1105 = vmatpush.msra.mxu0 %v1027
      %1106 = vmatpush.msra.mxu0 %v1024
      %1107 = vmatpush.msra.mxu0 %v1021
      %1108 = vmatpush.msra.mxu0 %v1018
      %1109 = vmatmul.f32.gmra.mxu0 %v1015
      %v1110 = vpop.f32.mrf.mxu0
      %v1111 = vadd.f32 %v1068, %v1110
      %1112 = vdwg.mxu0
      %1113 = vmatpush.msra.mxu0 %v1064
      %1114 = vmatpush.msra.mxu0 %v1061
      %1115 = vmatpush.msra.mxu0 %v1058
      %1116 = vmatpush.msra.mxu0 %v1055
      %1117 = vmatpush.msra.mxu0 %v1052
      %1118 = vmatpush.msra.mxu0 %v1049
      %1119 = vmatpush.msra.mxu0 %v1046
      %1120 = vmatpush.msra.mxu0 %v1043
      %1121 = vmatpush.msra.mxu0 %v1040
      %1122 = vmatpush.msra.mxu0 %v1037
      %1123 = vmatpush.msra.mxu0 %v1034
      %1124 = vmatpush.msra.mxu0 %v1031
      %1125 = vmatpush.msra.mxu0 %v1028
      %1126 = vmatpush.msra.mxu0 %v1025
      %1127 = vmatpush.msra.mxu0 %v1022
      %1128 = vmatpush.msra.mxu0 %v1019
      %1129 = vmatmul.f32.gmra.mxu0 %v1015
      %v1130 = vpop.f32.mrf.mxu0
      %v1131 = vadd.f32 %v1069, %v1130
      %1132 = vdwg.mxu0
      %v1133 = vmul.f32 %v1091, 0.5
      %v1134 = vmul.f32 %v1111, 0.5
      %v1135 = vmul.f32 %v1131, 0.5
      %v1136 = vmul.f32 %v1091, 0.70710677
      %v1137 = vmul.f32 %v1111, 0.70710677
      %v1138 = vmul.f32 %v1131, 0.70710677
      %v1139 = vmul.f32 %v1136, %v1136
      %v1140 = vmin.f32 16.0, %v1139
      %v1141 = vmul.f32 %v1140, 2.1237322e-06
      %v1142 = vadd.f32 %v1141, 0.00028619796
      %v1143 = vmul.f32 %v1140, %v1142
      %v1144 = vadd.f32 %v1143, 0.0036580483
      %v1145 = vmul.f32 %v1140, %v1144
      %v1146 = vadd.f32 %v1145, 0.05243302
      %v1147 = vmul.f32 %v1140, %v1146
      %v1148 = vadd.f32 %v1147, 0.18741608
      %v1149 = vmul.f32 %v1140, %v1148
      %v1150 = vadd.f32 %v1149, 1.1283791
      %v1151 = vmul.f32 %v1136, %v1150
      %v1152 = vmul.f32 %v1140, 3.8918573e-05
      %v1153 = vadd.f32 %v1152, 0.001143296
      %v1154 = vmul.f32 %v1140, %v1153
      %v1155 = vadd.f32 %v1154, 0.014752088
      %v1156 = vmul.f32 %v1140, %v1155
      %v1157 = vadd.f32 %v1156, 0.112945676
      %v1158 = vmul.f32 %v1140, %v1157
      %v1159 = vadd.f32 %v1158, 0.4994258
      %v1160 = vmul.f32 %v1140, %v1159
      %v1161 = vadd.f32 %v1160, 1.0
      %v1162 = vrcp.pop %v1161
      %v1163 = vmul.f32 %v1161, %v1162
      %v1164 = vsub.f32 1.0, %v1163
      %v1165 = vmul.f32 %v1162, %v1164
      %v1166 = vadd.f32 %v1162, %v1165
      %vm1167 = vweird.f32 %v1161
      %vm1168 = vweird.f32 %v1162
      %vm1169 = vmor %vm1167, %vm1168
      %v1170 = vsel %vm1169, %v1162, %v1166
      %v1171 = vand.u32 2147483647, %v1161
      %vm1172 = vcmp.eq.f32.partialorder %v1171, 8.507059e+37
      %v1173 = vand.u32 %v1161, 2147483648
      %v1174 = vor.u32 1.1754944e-38, %v1173
      %v1175 = vsel %vm1172, %v1174, %v1170
      %v1176 = vmul.f32 %v1151, %v1175
      %v1177 = vmin.f32 %v1176, 1.0
      %v1178 = vmax.f32 %v1177, -1.0
      %v1179 = vmul.f32 %v1137, %v1137
      %v1180 = vmin.f32 16.0, %v1179
      %v1181 = vmul.f32 %v1180, 2.1237322e-06
      %v1182 = vadd.f32 %v1181, 0.00028619796
      %v1183 = vmul.f32 %v1180, %v1182
      %v1184 = vadd.f32 %v1183, 0.0036580483
      %v1185 = vmul.f32 %v1180, %v1184
      %v1186 = vadd.f32 %v1185, 0.05243302
      %v1187 = vmul.f32 %v1180, %v1186
      %v1188 = vadd.f32 %v1187, 0.18741608
      %v1189 = vmul.f32 %v1180, %v1188
      %v1190 = vadd.f32 %v1189, 1.1283791
      %v1191 = vmul.f32 %v1137, %v1190
      %v1192 = vmul.f32 %v1180, 3.8918573e-05
      %v1193 = vadd.f32 %v1192, 0.001143296
      %v1194 = vmul.f32 %v1180, %v1193
      %v1195 = vadd.f32 %v1194, 0.014752088
      %v1196 = vmul.f32 %v1180, %v1195
      %v1197 = vadd.f32 %v1196, 0.112945676
      %v1198 = vmul.f32 %v1180, %v1197
      %v1199 = vadd.f32 %v1198, 0.4994258
      %v1200 = vmul.f32 %v1180, %v1199
      %v1201 = vadd.f32 %v1200, 1.0
      %v1202 = vrcp.pop %v1201
      %v1203 = vmul.f32 %v1201, %v1202
      %v1204 = vsub.f32 1.0, %v1203
      %v1205 = vmul.f32 %v1202, %v1204
      %v1206 = vadd.f32 %v1202, %v1205
      %vm1207 = vweird.f32 %v1201
      %vm1208 = vweird.f32 %v1202
      %vm1209 = vmor %vm1207, %vm1208
      %v1210 = vsel %vm1209, %v1202, %v1206
      %v1211 = vand.u32 2147483647, %v1201
      %vm1212 = vcmp.eq.f32.partialorder %v1211, 8.507059e+37
      %v1213 = vand.u32 %v1201, 2147483648
      %v1214 = vor.u32 1.1754944e-38, %v1213
      %v1215 = vsel %vm1212, %v1214, %v1210
      %v1216 = vmul.f32 %v1191, %v1215
      %v1217 = vmin.f32 %v1216, 1.0
      %v1218 = vmax.f32 %v1217, -1.0
      %v1219 = vmul.f32 %v1138, %v1138
      %v1220 = vmin.f32 16.0, %v1219
      %v1221 = vmul.f32 %v1220, 2.1237322e-06
      %v1222 = vadd.f32 %v1221, 0.00028619796
      %v1223 = vmul.f32 %v1220, %v1222
      %v1224 = vadd.f32 %v1223, 0.0036580483
      %v1225 = vmul.f32 %v1220, %v1224
      %v1226 = vadd.f32 %v1225, 0.05243302
      %v1227 = vmul.f32 %v1220, %v1226
      %v1228 = vadd.f32 %v1227, 0.18741608
      %v1229 = vmul.f32 %v1220, %v1228
      %v1230 = vadd.f32 %v1229, 1.1283791
      %v1231 = vmul.f32 %v1138, %v1230
      %v1232 = vmul.f32 %v1220, 3.8918573e-05
      %v1233 = vadd.f32 %v1232, 0.001143296
      %v1234 = vmul.f32 %v1220, %v1233
      %v1235 = vadd.f32 %v1234, 0.014752088
      %v1236 = vmul.f32 %v1220, %v1235
      %v1237 = vadd.f32 %v1236, 0.112945676
      %v1238 = vmul.f32 %v1220, %v1237
      %v1239 = vadd.f32 %v1238, 0.4994258
      %v1240 = vmul.f32 %v1220, %v1239
      %v1241 = vadd.f32 %v1240, 1.0
      %v1242 = vrcp.pop %v1241
      %v1243 = vmul.f32 %v1241, %v1242
      %v1244 = vsub.f32 1.0, %v1243
      %v1245 = vmul.f32 %v1242, %v1244
      %v1246 = vadd.f32 %v1242, %v1245
      %vm1247 = vweird.f32 %v1241
      %vm1248 = vweird.f32 %v1242
      %vm1249 = vmor %vm1247, %vm1248
      %v1250 = vsel %vm1249, %v1242, %v1246
      %v1251 = vand.u32 2147483647, %v1241
      %vm1252 = vcmp.eq.f32.partialorder %v1251, 8.507059e+37
      %v1253 = vand.u32 %v1241, 2147483648
      %v1254 = vor.u32 1.1754944e-38, %v1253
      %v1255 = vsel %vm1252, %v1254, %v1250
      %v1256 = vmul.f32 %v1231, %v1255
      %v1257 = vmin.f32 %v1256, 1.0
      %v1258 = vmax.f32 %v1257, -1.0
      %v1259 = vadd.f32 %v1178, 1.0
      %v1260 = vadd.f32 %v1218, 1.0
      %v1261 = vadd.f32 %v1258, 1.0
      %v1262 = vmul.f32 %v1133, %v1259
      %v1263 = vmul.f32 %v1134, %v1260
      %v1264 = vmul.f32 %v1135, %v1261
      %v1265 = vld [vmem:[%s6] sm:$0xff]
      %v1266 = vld [vmem:[%s6 + $0x8] sm:$0xff]
      %v1267 = vld [vmem:[%s6 + $0x10] sm:$0xff]
      %v1268 = vld [vmem:[%s6 + $0x18] sm:$0xff]
      %v1269 = vld [vmem:[%s6 + $0x20] sm:$0xff]
      %v1270 = vld [vmem:[%s6 + $0x28] sm:$0xff]
      %v1271 = vld [vmem:[%s6 + $0x30] sm:$0xff]
      %v1272 = vld [vmem:[%s6 + $0x38] sm:$0xff]
      %v1273 = vld [vmem:[%s6 + $0x40] sm:$0xff]
      %v1274 = vld [vmem:[%s6 + $0x48] sm:$0xff]
      %v1275 = vld [vmem:[%s6 + $0x50] sm:$0xff]
      %v1276 = vld [vmem:[%s6 + $0x58] sm:$0xff]
      %v1277 = vld [vmem:[%s6 + $0x60] sm:$0xff]
      %v1278 = vld [vmem:[%s6 + $0x68] sm:$0xff]
      %v1279 = vld [vmem:[%s6 + $0x70] sm:$0xff]
      %v1280 = vld [vmem:[%s6 + $0x78] sm:$0xff]
      %v1281 = vld [vmem:[%s6 + $0x80] sm:$0xff]
      %v1282 = vld [vmem:[%s6 + $0x88] sm:$0xff]
      %v1283 = vld [vmem:[%s6 + $0x90] sm:$0xff]
      %v1284 = vld [vmem:[%s6 + $0x98] sm:$0xff]
      %v1285 = vld [vmem:[%s6 + $0xa0] sm:$0xff]
      %v1286 = vld [vmem:[%s6 + $0xa8] sm:$0xff]
      %v1287 = vld [vmem:[%s6 + $0xb0] sm:$0xff]
      %v1288 = vld [vmem:[%s6 + $0xb8] sm:$0xff]
      %v1289 = vld [vmem:[%s6 + $0xc0] sm:$0xff]
      %v1290 = vld [vmem:[%s6 + $0xc8] sm:$0xff]
      %v1291 = vld [vmem:[%s6 + $0xd0] sm:$0xff]
      %v1292 = vld [vmem:[%s6 + $0xd8] sm:$0xff]
      %v1293 = vld [vmem:[%s6 + $0xe0] sm:$0xff]
      %v1294 = vld [vmem:[%s6 + $0xe8] sm:$0xff]
      %v1295 = vld [vmem:[%s6 + $0xf0] sm:$0xff]
      %v1296 = vld [vmem:[%s6 + $0xf8] sm:$0xff]
      %v1297 = vld [vmem:[%s6 + $0x100] sm:$0xff]
      %v1298 = vld [vmem:[%s6 + $0x108] sm:$0xff]
      %v1299 = vld [vmem:[%s6 + $0x110] sm:$0xff]
      %v1300 = vld [vmem:[%s6 + $0x118] sm:$0xff]
      %v1301 = vld [vmem:[%s6 + $0x120] sm:$0xff]
      %v1302 = vld [vmem:[%s6 + $0x128] sm:$0xff]
      %v1303 = vld [vmem:[%s6 + $0x130] sm:$0xff]
      %v1304 = vld [vmem:[%s6 + $0x138] sm:$0xff]
      %v1305 = vld [vmem:[%s6 + $0x140] sm:$0xff]
      %v1306 = vld [vmem:[%s6 + $0x148] sm:$0xff]
      %v1307 = vld [vmem:[%s6 + $0x150] sm:$0xff]
      %v1308 = vld [vmem:[%s6 + $0x158] sm:$0xff]
      %v1309 = vld [vmem:[%s6 + $0x160] sm:$0xff]
      %v1310 = vld [vmem:[%s6 + $0x168] sm:$0xff]
      %v1311 = vld [vmem:[%s6 + $0x170] sm:$0xff]
      %v1312 = vld [vmem:[%s6 + $0x178] sm:$0xff]
      %v1313 = vld [vmem:[%s12] sm:$0x1]
      %v1315 = vperm.slane %v1313, 0
      %1317 = vmatpush.msra.mxu0 %v1280
      %1318 = vmatpush.msra.mxu0 %v1279
      %1319 = vmatpush.msra.mxu0 %v1278
      %1320 = vmatpush.msra.mxu0 %v1277
      %1321 = vmatpush.msra.mxu0 %v1276
      %1322 = vmatpush.msra.mxu0 %v1275
      %1323 = vmatpush.msra.mxu0 %v1274
      %1324 = vmatpush.msra.mxu0 %v1273
      %1325 = vmatpush.msra.mxu0 %v1272
      %1326 = vmatpush.msra.mxu0 %v1271
      %1327 = vmatpush.msra.mxu0 %v1270
      %1328 = vmatpush.msra.mxu0 %v1269
      %1329 = vmatpush.msra.mxu0 %v1268
      %1330 = vmatpush.msra.mxu0 %v1267
      %1331 = vmatpush.msra.mxu0 %v1266
      %1332 = vmatpush.msra.mxu0 %v1265
      %1333 = vmatmul.f32.gmra.mxu0 %v1262
      %v1334 = vpop.f32.mrf.mxu0
      %v1335 = vadd.f32 %v1315, %v1334
      %1336 = vdwg.mxu0
      %1337 = vmatpush.msra.mxu0 %v1296
      %1338 = vmatpush.msra.mxu0 %v1295
      %1339 = vmatpush.msra.mxu0 %v1294
      %1340 = vmatpush.msra.mxu0 %v1293
      %1341 = vmatpush.msra.mxu0 %v1292
      %1342 = vmatpush.msra.mxu0 %v1291
      %1343 = vmatpush.msra.mxu0 %v1290
      %1344 = vmatpush.msra.mxu0 %v1289
      %1345 = vmatpush.msra.mxu0 %v1288
      %1346 = vmatpush.msra.mxu0 %v1287
      %1347 = vmatpush.msra.mxu0 %v1286
      %1348 = vmatpush.msra.mxu0 %v1285
      %1349 = vmatpush.msra.mxu0 %v1284
      %1350 = vmatpush.msra.mxu0 %v1283
      %1351 = vmatpush.msra.mxu0 %v1282
      %1352 = vmatpush.msra.mxu0 %v1281
      %1353 = vmatmul.f32.gmra.mxu0 %v1263
      %v1354 = vpop.f32.mrf.mxu0
      %v1355 = vadd.f32 %v1335, %v1354
      %1356 = vdwg.mxu0
      %1357 = vmatpush.msra.mxu0 %v1312
      %1358 = vmatpush.msra.mxu0 %v1311
      %1359 = vmatpush.msra.mxu0 %v1310
      %1360 = vmatpush.msra.mxu0 %v1309
      %1361 = vmatpush.msra.mxu0 %v1308
      %1362 = vmatpush.msra.mxu0 %v1307
      %1363 = vmatpush.msra.mxu0 %v1306
      %1364 = vmatpush.msra.mxu0 %v1305
      %1365 = vmatpush.msra.mxu0 %v1304
      %1366 = vmatpush.msra.mxu0 %v1303
      %1367 = vmatpush.msra.mxu0 %v1302
      %1368 = vmatpush.msra.mxu0 %v1301
      %1369 = vmatpush.msra.mxu0 %v1300
      %1370 = vmatpush.msra.mxu0 %v1299
      %1371 = vmatpush.msra.mxu0 %v1298
      %1372 = vmatpush.msra.mxu0 %v1297
      %1373 = vmatmul.f32.gmra.mxu0 %v1264
      %v1374 = vpop.f32.mrf.mxu0
      %v1375 = vadd.f32 %v1355, %v1374
      %1376 = vdwg.mxu0
      %1377 = vst [vmem:[%s435] sm:$0xff] %v1375
      %p1378 = scmp.lt.s32.totalorder %s24, 1
      %s1379 = scalar_select %p1378, %s24, 1
      %s1380 = smul.addr %s1379, 8
      %s1381 = scalar_lea.vmem %s13, %s1380
      // Predicated region
      $region73: #{block_forward.1} parent=71 // pred_check
        %p1382 = pneg %p320
      $region74: #{block_forward.1} parent=71 // pred_check_branch
        %1384 = sbr.rel (%p1382) target = $region76
      $region75: #{block_forward.1} parent=71 // pred_region
        _
      $region76: #{block_forward.1} parent=71 // pred_fallthru
        _
    $region72: #{block_forward.1} parent=5 // pred_fallthru
      _
    %p1385 = scmp.le.s32.totalorder 2, %s19
    // Predicated region
    $region77: #{block_forward.1} parent=5 // pred_check
      %p1386 = pneg %p1385
    $region78: #{block_forward.1} parent=5 // pred_check_branch
      %1388 = sbr.rel (%p1386) target = $region80
    $region79: #{block_forward.1} parent=5 // pred_region
      %s1389 = ssub.s32 %s19, 2
      // Predicated region
      $region81: #{block_forward.1} parent=79 // pred_check
        %p1390 = pneg %p326
      $region82: #{block_forward.1} parent=79 // pred_check_branch
        %1392 = sbr.rel (%p1390) target = $region84
      $region83: #{block_forward.1} parent=79 // pred_region
        %p1393 = scmp.lt.s32.totalorder %s25, 1
        %s1394 = scalar_select %p1393, %s25, 1
        %s1395 = smul.addr %s1394, 8
        %s1396 = scalar_lea.vmem %s13, %s1395
      $region84: #{block_forward.1} parent=79 // pred_fallthru
        _
    $region80: #{block_forward.1} parent=5 // pred_fallthru
      _
  $region6: #{block_forward.1} parent=0 // loop_footer
    %s23 = sadd.s32 1, %s19
  $region7: #{block_forward.1} parent=0 // loop_footer_branch
    %18 = sbr.rel target = $region3
  $region8: #{block_forward.1} parent=0 // loop_exit
    _

</llo_original>
